<compile_context>
chip_gen: v7x
topology: tpu7x:2x2x1
jax: 0.10.0
libtpu: 0.0.40
codegen_flags: <defaults>
</compile_context>

<pallas_src>
import inspect
import math

import jax
import jax.numpy as jnp
from jax.experimental import pallas as pl
from jax.experimental.pallas import tpu as pltpu


# --------------------------------------------------------------------------------------
# Kernel
# --------------------------------------------------------------------------------------
def wm_kernel(x_ref, pm_ref,
              win_w_ref, win_b_ref,
              wkv_ref, bkv_ref,
              wctx_ref, bo_ref,
              hsum_t_ref,
              out_ref, newmem_ref):
    f32 = jnp.float32
    x = x_ref[...]                             # (Bb, D)           input_state block
    win_w = win_w_ref[...]                     # (D, 4D+M)         [Wq*scale | Ww | Wr | Wgx]
    win_b = win_b_ref[...]                     # (1, 4D+M)
    wkv = wkv_ref[...]                         # (D, 2D)           [Wk | Wv]
    bkv = bkv_ref[...]                         # (1, 2D)
    wctx = wctx_ref[...]                       # (D, 3D)           [Wo | Wo@Wgm]
    bo = bo_ref[...]                           # (1, D)
    hsum_t = hsum_t_ref[...]                   # (H, D)            head membership mask
    cdt = win_w.dtype                          # matmul-input compute dtype (f32 or bf16)

    Bb, D = x.shape
    H = hsum_t.shape[0]
    shared_mem = len(pm_ref.shape) == 2        # (M, D) shared memory_bank vs (Bb, M, D) per-batch
    M = pm_ref.shape[0] if shared_mem else pm_ref.shape[1]

    # ---- fused input-side projection: [q*scale | write | read | gate_x] (one MXU op) ----
    inproj = jnp.dot(x.astype(cdt), win_w, preferred_element_type=f32) + win_b   # (Bb, 4D+M)
    q_scaled = inproj[:, :D]                          # 1/sqrt(d_k) folded into Wq/bq wrapper-side
    write_c = jnp.tanh(inproj[:, D:2 * D])            # (Bb, D)
    read_pre = inproj[:, 2 * D:2 * D + M]             # (Bb, M)
    gate_x = inproj[:, 2 * D + M:]                    # (Bb, 2D)  x@Wgx + bg + bo@Wgm

    hs_f = hsum_t.astype(f32)                          # (H, D)
    qh = (q_scaled[:, None, :] * hs_f[None]).astype(cdt)   # (Bb, H, D) per-head masked query

    # ---- multi-head attention (query length 1), memory slots on the lane axis ----
    if shared_mem:
        mb = pm_ref[...]                               # (M, D) shared across the batch
        kv = jnp.dot(mb.astype(cdt), wkv, preferred_element_type=f32) + bkv      # (M, 2D)
        k = kv[:, :D].astype(cdt)                      # (M, D)
        v = kv[:, D:].astype(cdt)                      # (M, D)
        qh2 = qh.reshape(Bb * H, D)
        scores = jnp.dot(qh2, k.T, preferred_element_type=f32)                   # (Bb*H, M)
        s_max = jnp.max(scores, axis=-1, keepdims=True)
        p = jnp.exp(scores - s_max)
        attn = p * pl.reciprocal(jnp.sum(p, axis=-1, keepdims=True), approx=True)
        vw = jnp.dot(attn.astype(cdt), v, preferred_element_type=f32)            # (Bb*H, D)
        ctx = jnp.sum(vw.reshape(Bb, H, D) * hs_f[None], axis=1)                 # (Bb, D)
        pm3 = mb[None].astype(f32)                     # (1, M, D) residual, broadcasts over batch
    else:
        pm = pm_ref[...]                               # (Bb, M, D)
        kv = jnp.dot(pm.reshape(Bb * M, D).astype(cdt), wkv,
                     preferred_element_type=f32) + bkv                           # (Bb*M, 2D)
        k = kv[:, :D].reshape(Bb, M, D).astype(cdt)
        v = kv[:, D:].reshape(Bb, M, D).astype(cdt)
        scores = jnp.einsum('bhd,bmd->bhm', qh, k, preferred_element_type=f32)   # (Bb, H, M)
        s_max = jnp.max(scores, axis=-1, keepdims=True)
        p = jnp.exp(scores - s_max)
        attn = p * pl.reciprocal(jnp.sum(p, axis=-1, keepdims=True), approx=True)
        vw = jnp.einsum('bhm,bmd->bhd', attn.astype(cdt), v,
                        preferred_element_type=f32)                              # (Bb, H, D)
        ctx = jnp.sum(vw * hs_f[None], axis=1)                                   # (Bb, D)
        pm3 = pm.astype(f32)

    # ---- fused [mem_out | gate-from-memory] projection (one MXU op on the critical path) ----
    ctxp = jnp.dot(ctx.astype(cdt), wctx, preferred_element_type=f32)            # (Bb, 3D)
    mem_out = ctxp[:, :D] + bo
    out_ref[...] = mem_out.astype(out_ref.dtype)

    gates = jax.nn.sigmoid(gate_x + ctxp[:, D:])                                 # (Bb, 2D)
    update_s = gates[:, :D]
    forget_s = gates[:, D:]

    # ---- read weights: softmax over memory_size (lane dim) ----
    r_max = jnp.max(read_pre, axis=-1, keepdims=True)
    r_exp = jnp.exp(read_pre - r_max)
    read_w = r_exp * pl.reciprocal(jnp.sum(r_exp, axis=-1, keepdims=True), approx=True)  # (Bb, M)

    # ---- memory update ----
    new_c = write_c * update_s                                                   # (Bb, D)
    newmem_ref[...] = (pm3 * forget_s[:, None, :]
                       + new_c[:, None, :] * read_w[:, :, None]).astype(newmem_ref.dtype)


# --------------------------------------------------------------------------------------
# Wrapper
# --------------------------------------------------------------------------------------
def _supports_pipeline_mode():
    if not hasattr(pl, "Buffered"):
        return False
    try:
        return "pipeline_mode" in inspect.signature(pl.BlockSpec).parameters
    except (TypeError, ValueError):
        return True  # cannot introspect; rely on runtime fallback


_HAS_PIPELINE_MODE = _supports_pipeline_mode()


def _vmem_limit_bytes():
    """Generation-aware scoped-VMEM cap: 75% of per-core VMEM.

    v5e/v6e (128 MiB) -> ~96 MiB, v7x (64 MiB per TC) -> ~48 MiB. Conservative fallback 48 MiB.
    """
    try:
        info = pltpu.get_tpu_info()
        cap = getattr(info, "vmem_capacity_bytes", None)
        if cap:
            cap = min(int(cap), 128 << 20)
            return cap * 3 // 4
    except Exception:
        pass
    return 48 << 20


def working_memory_forward(input_state, previous_memory, params, n_heads,
                           *, use_bf16=False, block_b=None):
    """Pallas implementation of WorkingMemoryModule.forward (eval mode)."""
    B, D = input_state.shape
    M = params["memory_bank"].shape[0]
    assert D % n_heads == 0
    d_k = D // n_heads
    scale = 1.0 / math.sqrt(d_k)
    f32 = jnp.float32

    shared_mem = previous_memory is None
    mem_in = params["memory_bank"] if shared_mem else previous_memory
    if not shared_mem:
        assert previous_memory.shape == (B, M, D)

    # ---- wrapper-side weight packing / fusion (zero kernel cost) ----
    wgx = jnp.concatenate([params["wu_t"][:D], params["wf_t"][:D]], axis=1)   # (D, 2D) rows for x
    wgm = jnp.concatenate([params["wu_t"][D:], params["wf_t"][D:]], axis=1)   # (D, 2D) rows for mem_out
    bg = jnp.concatenate([params["bu"], params["bf"]], axis=1) + params["bo"] @ wgm   # (1, 2D)
    win_w = jnp.concatenate(
        [params["wq_t"] * scale, params["ww_t"], params["wr_t"], wgx], axis=1)        # (D, 4D+M)
    win_b = jnp.concatenate(
        [params["bq"] * scale, params["bw"], params["br"], bg], axis=1)               # (1, 4D+M)
    wkv = jnp.concatenate([params["wk_t"], params["wv_t"]], axis=1)                   # (D, 2D)
    bkv = jnp.concatenate([params["bk"], params["bv"]], axis=1)                       # (1, 2D)
    w_ctx = jnp.concatenate([params["wo_t"], params["wo_t"] @ wgm], axis=1)           # (D, 3D)
    bo = params["bo"]
    hsum_t = (jnp.arange(D)[None, :] // d_k
              == jnp.arange(n_heads)[:, None]).astype(f32)                            # (H, D)

    x = input_state
    if use_bf16:
        cast = lambda a: a.astype(jnp.bfloat16)
        # NOTE: previous_memory / memory_bank stay f32 so the carried residual path is exact;
        # only the in-kernel copy fed to the K/V matmul is cast. Biases stay f32.
        x, win_w, wkv, w_ctx, hsum_t = map(cast, (x, win_w, wkv, w_ctx, hsum_t))

    weight_arrays = [win_w, win_b, wkv, bkv, w_ctx, bo, hsum_t]

    # ---- generation-aware VMEM budget & batch-block sizing ----
    vmem_limit = int(_vmem_limit_bytes())
    single_buffer_w = _HAS_PIPELINE_MODE
    wbuf = 1 if single_buffer_w else 2
    w_bytes = wbuf * sum(int(a.size) * a.dtype.itemsize for a in weight_arrays)
    if shared_mem:
        w_bytes += wbuf * int(mem_in.size) * mem_in.dtype.itemsize
    per_row = 2 * D * x.dtype.itemsize                       # x block, double-buffered
    if not shared_mem:
        per_row += 2 * M * D * mem_in.dtype.itemsize         # previous_memory block
    per_row += 2 * (D + M * D) * 4                           # f32 outputs, double-buffered
    headroom = 4 << 20
    cap = max(1, (vmem_limit - w_bytes - headroom) // per_row)

    if block_b is None:
        cands = [d for d in range(1, B + 1)
                 if B % d == 0 and d <= cap and (d == B or d % 8 == 0)]
        if not cands:
            cands = [8 if B % 8 == 0 else B]
        block_b = max(cands)
        # keep >= 2 grid steps so the "parallel" axis shards across v7x's 2 TCs and
        # double-buffering still overlaps DMA with compute.
        if B >= 16 and B // block_b < 2:
            smaller = [d for d in cands if B // d >= 2]
            if smaller:
                block_b = max(smaller)
    assert B % block_b == 0 and (block_b == B or block_b % 8 == 0)
    grid = (B // block_b,)

    out_shape = (jax.ShapeDtypeStruct((B, D), f32),
                 jax.ShapeDtypeStruct((B, M, D), f32))

    def build(single_buf):
        def wspec(a):
            zeros = (0,) * a.ndim
            if single_buf:
                return pl.BlockSpec(a.shape, lambda i, z=zeros: z,
                                    pipeline_mode=pl.Buffered(1))
            return pl.BlockSpec(a.shape, lambda i, z=zeros: z)

        if shared_mem:
            pm_spec = wspec(mem_in)                                   # (M, D) resident
        else:
            pm_spec = pl.BlockSpec((block_b, M, D), lambda i: (i, 0, 0))
        in_specs = ([pl.BlockSpec((block_b, D), lambda i: (i, 0)), pm_spec]
                    + [wspec(a) for a in weight_arrays])
        out_specs = (pl.BlockSpec((block_b, D), lambda i: (i, 0)),
                     pl.BlockSpec((block_b, M, D), lambda i: (i, 0, 0)))
        return pl.pallas_call(
            wm_kernel,
            grid=grid,
            in_specs=in_specs,
            out_specs=out_specs,
            out_shape=out_shape,
            compiler_params=pltpu.CompilerParams(
                dimension_semantics=("parallel",),
                vmem_limit_bytes=vmem_limit))

    args = (x, mem_in, *weight_arrays)
    try:
        return build(single_buffer_w)(*args)
    except Exception:
        if not single_buffer_w:
            raise
        # Fallback: this JAX build rejects pl.Buffered(1) — use default double-buffered weights.
        return build(False)(*args)


# --------------------------------------------------------------------------------------
# Synthetic params + pure-JAX reference
# --------------------------------------------------------------------------------------
def init_params(key, d_model, memory_size, n_heads):
    """Deterministic synthetic init matching the module's parameter shapes (weights stored [in, out])."""
    D, M = d_model, memory_size

    def xavier(k, fan_in, fan_out):
        limit = math.sqrt(6.0 / (fan_in + fan_out))
        return jax.random.uniform(k, (fan_in, fan_out), jnp.float32, -limit, limit)

    def lin_bias(k, fan_in, size):
        bound = 1.0 / math.sqrt(fan_in)
        return jax.random.uniform(k, (1, size), jnp.float32, -bound, bound)

    ks = jax.random.split(key, 18)
    return {
        "memory_bank": jax.random.normal(ks[0], (M, D), jnp.float32),
        # nn.MultiheadAttention in_proj (q, k, v) and out_proj
        "wq_t": xavier(ks[1], D, D), "bq": lin_bias(ks[2], D, D),
        "wk_t": xavier(ks[3], D, D), "bk": lin_bias(ks[4], D, D),
        "wv_t": xavier(ks[5], D, D), "bv": lin_bias(ks[6], D, D),
        "wo_t": xavier(ks[7], D, D), "bo": lin_bias(ks[8], D, D),
        # update / forget gates: Linear(2D -> D)
        "wu_t": xavier(ks[9], 2 * D, D), "bu": lin_bias(ks[10], 2 * D, D),
        "wf_t": xavier(ks[11], 2 * D, D), "bf": lin_bias(ks[12], 2 * D, D),
        # write head: Linear(D -> D); read head: Linear(D -> M)
        "ww_t": xavier(ks[13], D, D), "bw": lin_bias(ks[14], D, D),
        "wr_t": xavier(ks[15], D, M), "br": lin_bias(ks[16], D, M),
    }


def reference(input_state, previous_memory, p, n_heads):
    """Pure-JAX reference of the PyTorch forward (eval mode)."""
    B, D = input_state.shape
    M = p["memory_bank"].shape[0]
    d_k = D // n_heads
    pm = (previous_memory if previous_memory is not None
          else jnp.broadcast_to(p["memory_bank"][None], (B, M, D)))
    x = input_state

    q = x @ p["wq_t"] + p["bq"]                    # (B, D)
    k = pm @ p["wk_t"] + p["bk"]                   # (B, M, D)
    v = pm @ p["wv_t"] + p["bv"]
    qh = q.reshape(B, n_heads, d_k)
    kh = k.reshape(B, M, n_heads, d_k)
    vh = v.reshape(B, M, n_heads, d_k)
    scores = jnp.einsum("bhe,bmhe->bhm", qh, kh) / math.sqrt(d_k)
    attn = jax.nn.softmax(scores, axis=-1)
    ctx = jnp.einsum("bhm,bmhe->bhe", attn, vh).reshape(B, D)
    mem_out = ctx @ p["wo_t"] + p["bo"]

    comb = jnp.concatenate([x, mem_out], axis=-1)
    upd = jax.nn.sigmoid(comb @ p["wu_t"] + p["bu"])
    fgt = jax.nn.sigmoid(comb @ p["wf_t"] + p["bf"])
    wrt = jnp.tanh(x @ p["ww_t"] + p["bw"])
    rdw = jax.nn.softmax(x @ p["wr_t"] + p["br"], axis=-1)

    new_mem = pm * fgt[:, None, :] + (wrt * upd)[:, None, :] * rdw[:, :, None]
    return mem_out, new_mem


if __name__ == "__main__":
    B, M, D, H = 2, 16, 32, 8          # batch, memory_size, d_model, num_heads (small test shapes)
    key = jax.random.PRNGKey(0)
    kx, kp, km, kb = jax.random.split(key, 4)
    params = init_params(kp, D, M, H)

    # --- path 1: previous_memory=None -> shared memory_bank (no (B,M,D) HBM broadcast) ---
    x = jax.random.normal(kx, (B, D), jnp.float32)
    mem_out, new_mem = working_memory_forward(x, None, params, H)
    mem_out = jax.block_until_ready(mem_out)
    new_mem = jax.block_until_ready(new_mem)
    ref_out, ref_mem = reference(x, None, params, H)
    assert mem_out.shape == (B, D) and new_mem.shape == (B, M, D)
    # tolerance covers the approximate EUP reciprocal in the softmaxes
    assert jnp.allclose(mem_out, ref_out, atol=1e-2, rtol=1e-2), \
        float(jnp.max(jnp.abs(mem_out - ref_out)))
    assert jnp.allclose(new_mem, ref_mem, atol=1e-2, rtol=1e-2), \
        float(jnp.max(jnp.abs(new_mem - ref_mem)))

    # --- path 2: explicit previous_memory, larger batch -> multi-step "parallel" grid ---
    B2 = 16
    x2 = jax.random.normal(kb, (B2, D), jnp.float32)
    pm2 = jax.random.normal(km, (B2, M, D), jnp.float32)
    mem_out2, new_mem2 = working_memory_forward(x2, pm2, params, H)
    mem_out2 = jax.block_until_ready(mem_out2)
    new_mem2 = jax.block_until_ready(new_mem2)
    ref_out2, ref_mem2 = reference(x2, pm2, params, H)
    assert jnp.allclose(mem_out2, ref_out2, atol=1e-2, rtol=1e-2), \
        float(jnp.max(jnp.abs(mem_out2 - ref_out2)))
    assert jnp.allclose(new_mem2, ref_mem2, atol=1e-2, rtol=1e-2), \
        float(jnp.max(jnp.abs(new_mem2 - ref_mem2)))

    print("KERNEL_OK")
</pallas_src>

<mosaic_0001>
module attributes {stable_mosaic.version = 11 : i64} {
  func.func @wm_kernel(%arg0: i32, %arg1: memref<2x32xf32, #tpu.memory_space<vmem>>, %arg2: memref<16x32xf32, #tpu.memory_space<vmem>>, %arg3: memref<32x144xf32, #tpu.memory_space<vmem>>, %arg4: memref<1x144xf32, #tpu.memory_space<vmem>>, %arg5: memref<32x64xf32, #tpu.memory_space<vmem>>, %arg6: memref<1x64xf32, #tpu.memory_space<vmem>>, %arg7: memref<32x96xf32, #tpu.memory_space<vmem>>, %arg8: memref<1x32xf32, #tpu.memory_space<vmem>>, %arg9: memref<8x32xf32, #tpu.memory_space<vmem>>, %arg10: memref<2x32xf32, #tpu.memory_space<vmem>>, %arg11: memref<2x16x32xf32, #tpu.memory_space<vmem>>) attributes {dimension_semantics = [#tpu.dimension_semantics<parallel>], iteration_bounds = array<i64: 1>, scalar_prefetch = 0 : i64, scratch_operands = 0 : i64, tpu.core_type = #tpu.core_type<tc>, window_params = [{transform_indices = @transform_0, window_bounds = array<i64: 2, 32>}, {pipeline_mode = #tpu.pipeline_mode<synchronous>, transform_indices = @transform_1, window_bounds = array<i64: 16, 32>}, {pipeline_mode = #tpu.pipeline_mode<synchronous>, transform_indices = @transform_2, window_bounds = array<i64: 32, 144>}, {pipeline_mode = #tpu.pipeline_mode<synchronous>, transform_indices = @transform_3, window_bounds = array<i64: 1, 144>}, {pipeline_mode = #tpu.pipeline_mode<synchronous>, transform_indices = @transform_4, window_bounds = array<i64: 32, 64>}, {pipeline_mode = #tpu.pipeline_mode<synchronous>, transform_indices = @transform_5, window_bounds = array<i64: 1, 64>}, {pipeline_mode = #tpu.pipeline_mode<synchronous>, transform_indices = @transform_6, window_bounds = array<i64: 32, 96>}, {pipeline_mode = #tpu.pipeline_mode<synchronous>, transform_indices = @transform_7, window_bounds = array<i64: 1, 32>}, {pipeline_mode = #tpu.pipeline_mode<synchronous>, transform_indices = @transform_8, window_bounds = array<i64: 8, 32>}, {transform_indices = @transform_9, window_bounds = array<i64: 2, 32>}, {transform_indices = @transform_10, window_bounds = array<i64: 2, 16, 32>}]} {
    %c0 = arith.constant 0 : index
    %c0_0 = arith.constant 0 : index
    %0 = vector.load %arg1[%c0, %c0_0] : memref<2x32xf32, #tpu.memory_space<vmem>>, vector<2x32xf32>
    %c0_1 = arith.constant 0 : index
    %c0_2 = arith.constant 0 : index
    %1 = vector.load %arg3[%c0_1, %c0_2] : memref<32x144xf32, #tpu.memory_space<vmem>>, vector<32x144xf32>
    %c0_3 = arith.constant 0 : index
    %c0_4 = arith.constant 0 : index
    %2 = vector.load %arg4[%c0_3, %c0_4] : memref<1x144xf32, #tpu.memory_space<vmem>>, vector<1x144xf32>
    %c0_5 = arith.constant 0 : index
    %c0_6 = arith.constant 0 : index
    %3 = vector.load %arg5[%c0_5, %c0_6] : memref<32x64xf32, #tpu.memory_space<vmem>>, vector<32x64xf32>
    %c0_7 = arith.constant 0 : index
    %c0_8 = arith.constant 0 : index
    %4 = vector.load %arg6[%c0_7, %c0_8] : memref<1x64xf32, #tpu.memory_space<vmem>>, vector<1x64xf32>
    %c0_9 = arith.constant 0 : index
    %c0_10 = arith.constant 0 : index
    %5 = vector.load %arg7[%c0_9, %c0_10] : memref<32x96xf32, #tpu.memory_space<vmem>>, vector<32x96xf32>
    %c0_11 = arith.constant 0 : index
    %c0_12 = arith.constant 0 : index
    %6 = vector.load %arg8[%c0_11, %c0_12] : memref<1x32xf32, #tpu.memory_space<vmem>>, vector<1x32xf32>
    %c0_13 = arith.constant 0 : index
    %c0_14 = arith.constant 0 : index
    %7 = vector.load %arg9[%c0_13, %c0_14] : memref<8x32xf32, #tpu.memory_space<vmem>>, vector<8x32xf32>
    %cst = arith.constant dense<0.000000e+00> : vector<2x144xf32>
    %8 = tpu.matmul %0, %1, %cst {dimension_numbers = #tpu.dot_dimension_numbers<[1], [0], [0], [1], [0, 0, 1, 1], [], []>} : vector<2x32xf32>, vector<32x144xf32>, vector<2x144xf32> -> vector<2x144xf32>
    %9 = vector.broadcast %2 : vector<1x144xf32> to vector<2x144xf32>
    %10 = arith.addf %8, %9 : vector<2x144xf32>
    %11 = vector.extract_strided_slice %10 {offsets = [0, 0], sizes = [2, 32], strides = [1, 1]} : vector<2x144xf32> to vector<2x32xf32>
    %12 = vector.extract_strided_slice %10 {offsets = [0, 32], sizes = [2, 32], strides = [1, 1]} : vector<2x144xf32> to vector<2x32xf32>
    %13 = math.tanh %12 : vector<2x32xf32>
    %14 = vector.extract_strided_slice %10 {offsets = [0, 64], sizes = [2, 16], strides = [1, 1]} : vector<2x144xf32> to vector<2x16xf32>
    %15 = vector.extract_strided_slice %10 {offsets = [0, 80], sizes = [2, 64], strides = [1, 1]} : vector<2x144xf32> to vector<2x64xf32>
    %16 = vector.shape_cast %11 : vector<2x32xf32> to vector<2x1x32xf32>
    %17 = vector.shape_cast %7 : vector<8x32xf32> to vector<1x8x32xf32>
    %18 = vector.broadcast %16 : vector<2x1x32xf32> to vector<2x8x32xf32>
    %19 = vector.broadcast %17 : vector<1x8x32xf32> to vector<2x8x32xf32>
    %20 = arith.mulf %18, %19 : vector<2x8x32xf32>
    %c0_15 = arith.constant 0 : index
    %c0_16 = arith.constant 0 : index
    %21 = vector.load %arg2[%c0_15, %c0_16] : memref<16x32xf32, #tpu.memory_space<vmem>>, vector<16x32xf32>
    %cst_17 = arith.constant dense<0.000000e+00> : vector<16x64xf32>
    %22 = tpu.matmul %21, %3, %cst_17 {dimension_numbers = #tpu.dot_dimension_numbers<[1], [0], [0], [1], [0, 0, 1, 1], [], []>} : vector<16x32xf32>, vector<32x64xf32>, vector<16x64xf32> -> vector<16x64xf32>
    %23 = vector.broadcast %4 : vector<1x64xf32> to vector<16x64xf32>
    %24 = arith.addf %22, %23 : vector<16x64xf32>
    %25 = vector.extract_strided_slice %24 {offsets = [0, 0], sizes = [16, 32], strides = [1, 1]} : vector<16x64xf32> to vector<16x32xf32>
    %26 = vector.extract_strided_slice %24 {offsets = [0, 32], sizes = [16, 32], strides = [1, 1]} : vector<16x64xf32> to vector<16x32xf32>
    %27 = vector.shape_cast %20 : vector<2x8x32xf32> to vector<16x32xf32>
    %28 = tpu.transpose %25, [1, 0] : vector<16x32xf32> -> vector<32x16xf32>
    %cst_18 = arith.constant dense<0.000000e+00> : vector<16x16xf32>
    %29 = tpu.matmul %27, %28, %cst_18 {dimension_numbers = #tpu.dot_dimension_numbers<[1], [0], [0], [1], [0, 0, 1, 1], [], []>} : vector<16x32xf32>, vector<32x16xf32>, vector<16x16xf32> -> vector<16x16xf32>
    %cst_19 = arith.constant dense<0xFF800000> : vector<16xf32>
    %30 = vector.multi_reduction <maximumf>, %29, %cst_19 [1] : vector<16x16xf32> to vector<16xf32>
    %31 = vector.shape_cast %30 : vector<16xf32> to vector<16x1xf32>
    %32 = vector.broadcast %31 : vector<16x1xf32> to vector<16x16xf32>
    %33 = arith.subf %29, %32 : vector<16x16xf32>
    %34 = math.exp %33 : vector<16x16xf32>
    %cst_20 = arith.constant dense<0.000000e+00> : vector<16xf32>
    %35 = vector.multi_reduction <add>, %34, %cst_20 [1] : vector<16x16xf32> to vector<16xf32>
    %36 = vector.shape_cast %35 : vector<16xf32> to vector<16x1xf32>
    %37 = tpu.reciprocal %36 {approx = true} : vector<16x1xf32> -> vector<16x1xf32>
    %38 = vector.broadcast %37 : vector<16x1xf32> to vector<16x16xf32>
    %39 = arith.mulf %34, %38 : vector<16x16xf32>
    %cst_21 = arith.constant dense<0.000000e+00> : vector<16x32xf32>
    %40 = tpu.matmul %39, %26, %cst_21 {dimension_numbers = #tpu.dot_dimension_numbers<[1], [0], [0], [1], [0, 0, 1, 1], [], []>} : vector<16x16xf32>, vector<16x32xf32>, vector<16x32xf32> -> vector<16x32xf32>
    %41 = vector.shape_cast %40 : vector<16x32xf32> to vector<2x8x32xf32>
    %42 = vector.shape_cast %7 : vector<8x32xf32> to vector<1x8x32xf32>
    %43 = vector.broadcast %42 : vector<1x8x32xf32> to vector<2x8x32xf32>
    %44 = arith.mulf %41, %43 : vector<2x8x32xf32>
    %cst_22 = arith.constant dense<0.000000e+00> : vector<2x32xf32>
    %45 = vector.multi_reduction <add>, %44, %cst_22 [1] : vector<2x8x32xf32> to vector<2x32xf32>
    %46 = vector.shape_cast %21 : vector<16x32xf32> to vector<1x16x32xf32>
    %cst_23 = arith.constant dense<0.000000e+00> : vector<2x96xf32>
    %47 = tpu.matmul %45, %5, %cst_23 {dimension_numbers = #tpu.dot_dimension_numbers<[1], [0], [0], [1], [0, 0, 1, 1], [], []>} : vector<2x32xf32>, vector<32x96xf32>, vector<2x96xf32> -> vector<2x96xf32>
    %48 = vector.extract_strided_slice %47 {offsets = [0, 0], sizes = [2, 32], strides = [1, 1]} : vector<2x96xf32> to vector<2x32xf32>
    %49 = vector.broadcast %6 : vector<1x32xf32> to vector<2x32xf32>
    %50 = arith.addf %48, %49 : vector<2x32xf32>
    %c0_24 = arith.constant 0 : index
    %c0_25 = arith.constant 0 : index
    %51 = vector.load %arg10[%c0_24, %c0_25] : memref<2x32xf32, #tpu.memory_space<vmem>>, vector<2x32xf32>
    tpu.vector_store %arg10[%c0_24, %c0_25], %50 {strides = array<i32>} : memref<2x32xf32, #tpu.memory_space<vmem>>, vector<2x32xf32>,
    %52 = vector.extract_strided_slice %47 {offsets = [0, 32], sizes = [2, 64], strides = [1, 1]} : vector<2x96xf32> to vector<2x64xf32>
    %53 = arith.addf %15, %52 : vector<2x64xf32>
    %54 = arith.negf %53 : vector<2x64xf32>
    %55 = math.exp %54 : vector<2x64xf32>
    %cst_26 = arith.constant 1.000000e+00 : f32
    %56 = vector.broadcast %cst_26 : f32 to vector<2x64xf32>
    %57 = arith.addf %56, %55 : vector<2x64xf32>
    %58 = arith.divf %56, %57 : vector<2x64xf32>
    %59 = vector.extract_strided_slice %58 {offsets = [0, 0], sizes = [2, 32], strides = [1, 1]} : vector<2x64xf32> to vector<2x32xf32>
    %60 = vector.extract_strided_slice %58 {offsets = [0, 32], sizes = [2, 32], strides = [1, 1]} : vector<2x64xf32> to vector<2x32xf32>
    %cst_27 = arith.constant dense<0xFF800000> : vector<2xf32>
    %61 = vector.multi_reduction <maximumf>, %14, %cst_27 [1] : vector<2x16xf32> to vector<2xf32>
    %62 = vector.shape_cast %61 : vector<2xf32> to vector<2x1xf32>
    %63 = vector.broadcast %62 : vector<2x1xf32> to vector<2x16xf32>
    %64 = arith.subf %14, %63 : vector<2x16xf32>
    %65 = math.exp %64 : vector<2x16xf32>
    %cst_28 = arith.constant dense<0.000000e+00> : vector<2xf32>
    %66 = vector.multi_reduction <add>, %65, %cst_28 [1] : vector<2x16xf32> to vector<2xf32>
    %67 = vector.shape_cast %66 : vector<2xf32> to vector<2x1xf32>
    %68 = tpu.reciprocal %67 {approx = true} : vector<2x1xf32> -> vector<2x1xf32>
    %69 = vector.broadcast %68 : vector<2x1xf32> to vector<2x16xf32>
    %70 = arith.mulf %65, %69 : vector<2x16xf32>
    %71 = arith.mulf %13, %59 : vector<2x32xf32>
    %72 = vector.shape_cast %60 : vector<2x32xf32> to vector<2x1x32xf32>
    %73 = vector.broadcast %46 : vector<1x16x32xf32> to vector<2x16x32xf32>
    %74 = vector.broadcast %72 : vector<2x1x32xf32> to vector<2x16x32xf32>
    %75 = arith.mulf %73, %74 : vector<2x16x32xf32>
    %76 = vector.shape_cast %71 : vector<2x32xf32> to vector<2x1x32xf32>
    %77 = vector.shape_cast %70 : vector<2x16xf32> to vector<2x16x1xf32>
    %78 = vector.broadcast %76 : vector<2x1x32xf32> to vector<2x16x32xf32>
    %79 = vector.broadcast %77 : vector<2x16x1xf32> to vector<2x16x32xf32>
    %80 = arith.mulf %78, %79 : vector<2x16x32xf32>
    %81 = arith.addf %75, %80 : vector<2x16x32xf32>
    %c0_29 = arith.constant 0 : index
    %c0_30 = arith.constant 0 : index
    %c0_31 = arith.constant 0 : index
    %82 = vector.load %arg11[%c0_29, %c0_30, %c0_31] : memref<2x16x32xf32, #tpu.memory_space<vmem>>, vector<2x16x32xf32>
    tpu.vector_store %arg11[%c0_29, %c0_30, %c0_31], %81 {strides = array<i32>} : memref<2x16x32xf32, #tpu.memory_space<vmem>>, vector<2x16x32xf32>,
    return
  }
  func.func @transform_0(%arg0: i32) -> (i32, i32) {
    %c0_i32 = arith.constant 0 : i32
    %c0_i32_0 = arith.constant 0 : i32
    return %arg0, %c0_i32 : i32, i32
  }
  func.func @transform_1(%arg0: i32) -> (i32, i32) {
    %c0_i32 = arith.constant 0 : i32
    %c0_i32_0 = arith.constant 0 : i32
    %c0_i32_1 = arith.constant 0 : i32
    return %c0_i32, %c0_i32_0 : i32, i32
  }
  func.func @transform_2(%arg0: i32) -> (i32, i32) {
    %c0_i32 = arith.constant 0 : i32
    %c0_i32_0 = arith.constant 0 : i32
    %c0_i32_1 = arith.constant 0 : i32
    return %c0_i32, %c0_i32_0 : i32, i32
  }
  func.func @transform_3(%arg0: i32) -> (i32, i32) {
    %c0_i32 = arith.constant 0 : i32
    %c0_i32_0 = arith.constant 0 : i32
    %c0_i32_1 = arith.constant 0 : i32
    return %c0_i32, %c0_i32_0 : i32, i32
  }
  func.func @transform_4(%arg0: i32) -> (i32, i32) {
    %c0_i32 = arith.constant 0 : i32
    %c0_i32_0 = arith.constant 0 : i32
    %c0_i32_1 = arith.constant 0 : i32
    return %c0_i32, %c0_i32_0 : i32, i32
  }
  func.func @transform_5(%arg0: i32) -> (i32, i32) {
    %c0_i32 = arith.constant 0 : i32
    %c0_i32_0 = arith.constant 0 : i32
    %c0_i32_1 = arith.constant 0 : i32
    return %c0_i32, %c0_i32_0 : i32, i32
  }
  func.func @transform_6(%arg0: i32) -> (i32, i32) {
    %c0_i32 = arith.constant 0 : i32
    %c0_i32_0 = arith.constant 0 : i32
    %c0_i32_1 = arith.constant 0 : i32
    return %c0_i32, %c0_i32_0 : i32, i32
  }
  func.func @transform_7(%arg0: i32) -> (i32, i32) {
    %c0_i32 = arith.constant 0 : i32
    %c0_i32_0 = arith.constant 0 : i32
    %c0_i32_1 = arith.constant 0 : i32
    return %c0_i32, %c0_i32_0 : i32, i32
  }
  func.func @transform_8(%arg0: i32) -> (i32, i32) {
    %c0_i32 = arith.constant 0 : i32
    %c0_i32_0 = arith.constant 0 : i32
    %c0_i32_1 = arith.constant 0 : i32
    return %c0_i32, %c0_i32_0 : i32, i32
  }
  func.func @transform_9(%arg0: i32) -> (i32, i32) {
    %c0_i32 = arith.constant 0 : i32
    %c0_i32_0 = arith.constant 0 : i32
    return %arg0, %c0_i32 : i32, i32
  }
  func.func @transform_10(%arg0: i32) -> (i32, i32, i32) {
    %c0_i32 = arith.constant 0 : i32
    %c0_i32_0 = arith.constant 0 : i32
    %c0_i32_1 = arith.constant 0 : i32
    return %arg0, %c0_i32, %c0_i32_0 : i32, i32, i32
  }
}

module attributes {stable_mosaic.version = 11 : i64} {
  func.func @wm_kernel(%arg0: i32, %arg1: memref<2x32xf32, #tpu.memory_space<vmem>>, %arg2: memref<16x32xf32, #tpu.memory_space<vmem>>, %arg3: memref<32x144xf32, #tpu.memory_space<vmem>>, %arg4: memref<1x144xf32, #tpu.memory_space<vmem>>, %arg5: memref<32x64xf32, #tpu.memory_space<vmem>>, %arg6: memref<1x64xf32, #tpu.memory_space<vmem>>, %arg7: memref<32x96xf32, #tpu.memory_space<vmem>>, %arg8: memref<1x32xf32, #tpu.memory_space<vmem>>, %arg9: memref<8x32xf32, #tpu.memory_space<vmem>>, %arg10: memref<2x32xf32, #tpu.memory_space<vmem>>, %arg11: memref<2x16x32xf32, #tpu.memory_space<vmem>>) attributes {dimension_semantics = [#tpu.dimension_semantics<parallel>], iteration_bounds = array<i64: 1>, scalar_prefetch = 0 : i64, scratch_operands = 0 : i64, tpu.core_type = #tpu.core_type<tc>, window_params = [{transform_indices = @transform_0, window_bounds = array<i64: 2, 32>}, {pipeline_mode = #tpu.pipeline_mode<synchronous>, transform_indices = @transform_1, window_bounds = array<i64: 16, 32>}, {pipeline_mode = #tpu.pipeline_mode<synchronous>, transform_indices = @transform_2, window_bounds = array<i64: 32, 144>}, {pipeline_mode = #tpu.pipeline_mode<synchronous>, transform_indices = @transform_3, window_bounds = array<i64: 1, 144>}, {pipeline_mode = #tpu.pipeline_mode<synchronous>, transform_indices = @transform_4, window_bounds = array<i64: 32, 64>}, {pipeline_mode = #tpu.pipeline_mode<synchronous>, transform_indices = @transform_5, window_bounds = array<i64: 1, 64>}, {pipeline_mode = #tpu.pipeline_mode<synchronous>, transform_indices = @transform_6, window_bounds = array<i64: 32, 96>}, {pipeline_mode = #tpu.pipeline_mode<synchronous>, transform_indices = @transform_7, window_bounds = array<i64: 1, 32>}, {pipeline_mode = #tpu.pipeline_mode<synchronous>, transform_indices = @transform_8, window_bounds = array<i64: 8, 32>}, {transform_indices = @transform_9, window_bounds = array<i64: 2, 32>}, {transform_indices = @transform_10, window_bounds = array<i64: 2, 16, 32>}]} {
    %c0 = arith.constant 0 : index
    %c0_0 = arith.constant 0 : index
    %0 = vector.load %arg1[%c0, %c0_0] : memref<2x32xf32, #tpu.memory_space<vmem>>, vector<2x32xf32>
    %c0_1 = arith.constant 0 : index
    %c0_2 = arith.constant 0 : index
    %1 = vector.load %arg3[%c0_1, %c0_2] : memref<32x144xf32, #tpu.memory_space<vmem>>, vector<32x144xf32>
    %c0_3 = arith.constant 0 : index
    %c0_4 = arith.constant 0 : index
    %2 = vector.load %arg4[%c0_3, %c0_4] : memref<1x144xf32, #tpu.memory_space<vmem>>, vector<1x144xf32>
    %c0_5 = arith.constant 0 : index
    %c0_6 = arith.constant 0 : index
    %3 = vector.load %arg5[%c0_5, %c0_6] : memref<32x64xf32, #tpu.memory_space<vmem>>, vector<32x64xf32>
    %c0_7 = arith.constant 0 : index
    %c0_8 = arith.constant 0 : index
    %4 = vector.load %arg6[%c0_7, %c0_8] : memref<1x64xf32, #tpu.memory_space<vmem>>, vector<1x64xf32>
    %c0_9 = arith.constant 0 : index
    %c0_10 = arith.constant 0 : index
    %5 = vector.load %arg7[%c0_9, %c0_10] : memref<32x96xf32, #tpu.memory_space<vmem>>, vector<32x96xf32>
    %c0_11 = arith.constant 0 : index
    %c0_12 = arith.constant 0 : index
    %6 = vector.load %arg8[%c0_11, %c0_12] : memref<1x32xf32, #tpu.memory_space<vmem>>, vector<1x32xf32>
    %c0_13 = arith.constant 0 : index
    %c0_14 = arith.constant 0 : index
    %7 = vector.load %arg9[%c0_13, %c0_14] : memref<8x32xf32, #tpu.memory_space<vmem>>, vector<8x32xf32>
    %cst = arith.constant dense<0.000000e+00> : vector<2x144xf32>
    %8 = tpu.matmul %0, %1, %cst {dimension_numbers = #tpu.dot_dimension_numbers<[1], [0], [0], [1], [0, 0, 1, 1], [], []>} : vector<2x32xf32>, vector<32x144xf32>, vector<2x144xf32> -> vector<2x144xf32>
    %9 = vector.broadcast %2 : vector<1x144xf32> to vector<2x144xf32>
    %10 = arith.addf %8, %9 : vector<2x144xf32>
    %11 = vector.extract_strided_slice %10 {offsets = [0, 0], sizes = [2, 32], strides = [1, 1]} : vector<2x144xf32> to vector<2x32xf32>
    %12 = vector.extract_strided_slice %10 {offsets = [0, 32], sizes = [2, 32], strides = [1, 1]} : vector<2x144xf32> to vector<2x32xf32>
    %13 = math.tanh %12 : vector<2x32xf32>
    %14 = vector.extract_strided_slice %10 {offsets = [0, 64], sizes = [2, 16], strides = [1, 1]} : vector<2x144xf32> to vector<2x16xf32>
    %15 = vector.extract_strided_slice %10 {offsets = [0, 80], sizes = [2, 64], strides = [1, 1]} : vector<2x144xf32> to vector<2x64xf32>
    %16 = vector.shape_cast %11 : vector<2x32xf32> to vector<2x1x32xf32>
    %17 = vector.shape_cast %7 : vector<8x32xf32> to vector<1x8x32xf32>
    %18 = vector.broadcast %16 : vector<2x1x32xf32> to vector<2x8x32xf32>
    %19 = vector.broadcast %17 : vector<1x8x32xf32> to vector<2x8x32xf32>
    %20 = arith.mulf %18, %19 : vector<2x8x32xf32>
    %c0_15 = arith.constant 0 : index
    %c0_16 = arith.constant 0 : index
    %21 = vector.load %arg2[%c0_15, %c0_16] : memref<16x32xf32, #tpu.memory_space<vmem>>, vector<16x32xf32>
    %cst_17 = arith.constant dense<0.000000e+00> : vector<16x64xf32>
    %22 = tpu.matmul %21, %3, %cst_17 {dimension_numbers = #tpu.dot_dimension_numbers<[1], [0], [0], [1], [0, 0, 1, 1], [], []>} : vector<16x32xf32>, vector<32x64xf32>, vector<16x64xf32> -> vector<16x64xf32>
    %23 = vector.broadcast %4 : vector<1x64xf32> to vector<16x64xf32>
    %24 = arith.addf %22, %23 : vector<16x64xf32>
    %25 = vector.extract_strided_slice %24 {offsets = [0, 0], sizes = [16, 32], strides = [1, 1]} : vector<16x64xf32> to vector<16x32xf32>
    %26 = vector.extract_strided_slice %24 {offsets = [0, 32], sizes = [16, 32], strides = [1, 1]} : vector<16x64xf32> to vector<16x32xf32>
    %27 = vector.shape_cast %20 : vector<2x8x32xf32> to vector<16x32xf32>
    %28 = tpu.transpose %25, [1, 0] : vector<16x32xf32> -> vector<32x16xf32>
    %cst_18 = arith.constant dense<0.000000e+00> : vector<16x16xf32>
    %29 = tpu.matmul %27, %28, %cst_18 {dimension_numbers = #tpu.dot_dimension_numbers<[1], [0], [0], [1], [0, 0, 1, 1], [], []>} : vector<16x32xf32>, vector<32x16xf32>, vector<16x16xf32> -> vector<16x16xf32>
    %cst_19 = arith.constant dense<0xFF800000> : vector<16xf32>
    %30 = vector.multi_reduction <maximumf>, %29, %cst_19 [1] : vector<16x16xf32> to vector<16xf32>
    %31 = vector.shape_cast %30 : vector<16xf32> to vector<16x1xf32>
    %32 = vector.broadcast %31 : vector<16x1xf32> to vector<16x16xf32>
    %33 = arith.subf %29, %32 : vector<16x16xf32>
    %34 = math.exp %33 : vector<16x16xf32>
    %cst_20 = arith.constant dense<0.000000e+00> : vector<16xf32>
    %35 = vector.multi_reduction <add>, %34, %cst_20 [1] : vector<16x16xf32> to vector<16xf32>
    %36 = vector.shape_cast %35 : vector<16xf32> to vector<16x1xf32>
    %37 = tpu.reciprocal %36 {approx = true} : vector<16x1xf32> -> vector<16x1xf32>
    %38 = vector.broadcast %37 : vector<16x1xf32> to vector<16x16xf32>
    %39 = arith.mulf %34, %38 : vector<16x16xf32>
    %cst_21 = arith.constant dense<0.000000e+00> : vector<16x32xf32>
    %40 = tpu.matmul %39, %26, %cst_21 {dimension_numbers = #tpu.dot_dimension_numbers<[1], [0], [0], [1], [0, 0, 1, 1], [], []>} : vector<16x16xf32>, vector<16x32xf32>, vector<16x32xf32> -> vector<16x32xf32>
    %41 = vector.shape_cast %40 : vector<16x32xf32> to vector<2x8x32xf32>
    %42 = vector.shape_cast %7 : vector<8x32xf32> to vector<1x8x32xf32>
    %43 = vector.broadcast %42 : vector<1x8x32xf32> to vector<2x8x32xf32>
    %44 = arith.mulf %41, %43 : vector<2x8x32xf32>
    %cst_22 = arith.constant dense<0.000000e+00> : vector<2x32xf32>
    %45 = vector.multi_reduction <add>, %44, %cst_22 [1] : vector<2x8x32xf32> to vector<2x32xf32>
    %46 = vector.shape_cast %21 : vector<16x32xf32> to vector<1x16x32xf32>
    %cst_23 = arith.constant dense<0.000000e+00> : vector<2x96xf32>
    %47 = tpu.matmul %45, %5, %cst_23 {dimension_numbers = #tpu.dot_dimension_numbers<[1], [0], [0], [1], [0, 0, 1, 1], [], []>} : vector<2x32xf32>, vector<32x96xf32>, vector<2x96xf32> -> vector<2x96xf32>
    %48 = vector.extract_strided_slice %47 {offsets = [0, 0], sizes = [2, 32], strides = [1, 1]} : vector<2x96xf32> to vector<2x32xf32>
    %49 = vector.broadcast %6 : vector<1x32xf32> to vector<2x32xf32>
    %50 = arith.addf %48, %49 : vector<2x32xf32>
    %c0_24 = arith.constant 0 : index
    %c0_25 = arith.constant 0 : index
    %51 = vector.load %arg10[%c0_24, %c0_25] : memref<2x32xf32, #tpu.memory_space<vmem>>, vector<2x32xf32>
    tpu.vector_store %arg10[%c0_24, %c0_25], %50 {strides = array<i32>} : memref<2x32xf32, #tpu.memory_space<vmem>>, vector<2x32xf32>,
    %52 = vector.extract_strided_slice %47 {offsets = [0, 32], sizes = [2, 64], strides = [1, 1]} : vector<2x96xf32> to vector<2x64xf32>
    %53 = arith.addf %15, %52 : vector<2x64xf32>
    %54 = arith.negf %53 : vector<2x64xf32>
    %55 = math.exp %54 : vector<2x64xf32>
    %cst_26 = arith.constant 1.000000e+00 : f32
    %56 = vector.broadcast %cst_26 : f32 to vector<2x64xf32>
    %57 = arith.addf %56, %55 : vector<2x64xf32>
    %58 = arith.divf %56, %57 : vector<2x64xf32>
    %59 = vector.extract_strided_slice %58 {offsets = [0, 0], sizes = [2, 32], strides = [1, 1]} : vector<2x64xf32> to vector<2x32xf32>
    %60 = vector.extract_strided_slice %58 {offsets = [0, 32], sizes = [2, 32], strides = [1, 1]} : vector<2x64xf32> to vector<2x32xf32>
    %cst_27 = arith.constant dense<0xFF800000> : vector<2xf32>
    %61 = vector.multi_reduction <maximumf>, %14, %cst_27 [1] : vector<2x16xf32> to vector<2xf32>
    %62 = vector.shape_cast %61 : vector<2xf32> to vector<2x1xf32>
    %63 = vector.broadcast %62 : vector<2x1xf32> to vector<2x16xf32>
    %64 = arith.subf %14, %63 : vector<2x16xf32>
    %65 = math.exp %64 : vector<2x16xf32>
    %cst_28 = arith.constant dense<0.000000e+00> : vector<2xf32>
    %66 = vector.multi_reduction <add>, %65, %cst_28 [1] : vector<2x16xf32> to vector<2xf32>
    %67 = vector.shape_cast %66 : vector<2xf32> to vector<2x1xf32>
    %68 = tpu.reciprocal %67 {approx = true} : vector<2x1xf32> -> vector<2x1xf32>
    %69 = vector.broadcast %68 : vector<2x1xf32> to vector<2x16xf32>
    %70 = arith.mulf %65, %69 : vector<2x16xf32>
    %71 = arith.mulf %13, %59 : vector<2x32xf32>
    %72 = vector.shape_cast %60 : vector<2x32xf32> to vector<2x1x32xf32>
    %73 = vector.broadcast %46 : vector<1x16x32xf32> to vector<2x16x32xf32>
    %74 = vector.broadcast %72 : vector<2x1x32xf32> to vector<2x16x32xf32>
    %75 = arith.mulf %73, %74 : vector<2x16x32xf32>
    %76 = vector.shape_cast %71 : vector<2x32xf32> to vector<2x1x32xf32>
    %77 = vector.shape_cast %70 : vector<2x16xf32> to vector<2x16x1xf32>
    %78 = vector.broadcast %76 : vector<2x1x32xf32> to vector<2x16x32xf32>
    %79 = vector.broadcast %77 : vector<2x16x1xf32> to vector<2x16x32xf32>
    %80 = arith.mulf %78, %79 : vector<2x16x32xf32>
    %81 = arith.addf %75, %80 : vector<2x16x32xf32>
    %c0_29 = arith.constant 0 : index
    %c0_30 = arith.constant 0 : index
    %c0_31 = arith.constant 0 : index
    %82 = vector.load %arg11[%c0_29, %c0_30, %c0_31] : memref<2x16x32xf32, #tpu.memory_space<vmem>>, vector<2x16x32xf32>
    tpu.vector_store %arg11[%c0_29, %c0_30, %c0_31], %81 {strides = array<i32>} : memref<2x16x32xf32, #tpu.memory_space<vmem>>, vector<2x16x32xf32>,
    return
  }
  func.func @transform_0(%arg0: i32) -> (i32, i32) {
    %c0_i32 = arith.constant 0 : i32
    %c0_i32_0 = arith.constant 0 : i32
    return %arg0, %c0_i32 : i32, i32
  }
  func.func @transform_1(%arg0: i32) -> (i32, i32) {
    %c0_i32 = arith.constant 0 : i32
    %c0_i32_0 = arith.constant 0 : i32
    %c0_i32_1 = arith.constant 0 : i32
    return %c0_i32, %c0_i32_0 : i32, i32
  }
  func.func @transform_2(%arg0: i32) -> (i32, i32) {
    %c0_i32 = arith.constant 0 : i32
    %c0_i32_0 = arith.constant 0 : i32
    %c0_i32_1 = arith.constant 0 : i32
    return %c0_i32, %c0_i32_0 : i32, i32
  }
  func.func @transform_3(%arg0: i32) -> (i32, i32) {
    %c0_i32 = arith.constant 0 : i32
    %c0_i32_0 = arith.constant 0 : i32
    %c0_i32_1 = arith.constant 0 : i32
    return %c0_i32, %c0_i32_0 : i32, i32
  }
  func.func @transform_4(%arg0: i32) -> (i32, i32) {
    %c0_i32 = arith.constant 0 : i32
    %c0_i32_0 = arith.constant 0 : i32
    %c0_i32_1 = arith.constant 0 : i32
    return %c0_i32, %c0_i32_0 : i32, i32
  }
  func.func @transform_5(%arg0: i32) -> (i32, i32) {
    %c0_i32 = arith.constant 0 : i32
    %c0_i32_0 = arith.constant 0 : i32
    %c0_i32_1 = arith.constant 0 : i32
    return %c0_i32, %c0_i32_0 : i32, i32
  }
  func.func @transform_6(%arg0: i32) -> (i32, i32) {
    %c0_i32 = arith.constant 0 : i32
    %c0_i32_0 = arith.constant 0 : i32
    %c0_i32_1 = arith.constant 0 : i32
    return %c0_i32, %c0_i32_0 : i32, i32
  }
  func.func @transform_7(%arg0: i32) -> (i32, i32) {
    %c0_i32 = arith.constant 0 : i32
    %c0_i32_0 = arith.constant 0 : i32
    %c0_i32_1 = arith.constant 0 : i32
    return %c0_i32, %c0_i32_0 : i32, i32
  }
  func.func @transform_8(%arg0: i32) -> (i32, i32) {
    %c0_i32 = arith.constant 0 : i32
    %c0_i32_0 = arith.constant 0 : i32
    %c0_i32_1 = arith.constant 0 : i32
    return %c0_i32, %c0_i32_0 : i32, i32
  }
  func.func @transform_9(%arg0: i32) -> (i32, i32) {
    %c0_i32 = arith.constant 0 : i32
    %c0_i32_0 = arith.constant 0 : i32
    return %arg0, %c0_i32 : i32, i32
  }
  func.func @transform_10(%arg0: i32) -> (i32, i32, i32) {
    %c0_i32 = arith.constant 0 : i32
    %c0_i32_0 = arith.constant 0 : i32
    %c0_i32_1 = arith.constant 0 : i32
    return %arg0, %c0_i32, %c0_i32_0 : i32, i32, i32
  }
}

</mosaic_0001>

<llo_original>
// kernel: tpu_custom_call.1
$region0: #{tpu_custom_call.1}
  #allocation0 [shape = 'u32[]', space=smem, size = 0x4, offset = 0x4, fixed_abs, tag = 'smem constant byte address 0x4 - core index']
  #allocation1 [shape = 'u32[144,128]{1,0:T(1,128)}', space=vmem, size = 0x12000, scoped, tag = 'internal scratch']
  %s0 = inlined_call_operand.hbm [shape: f32[2,32], index: 0, kind: input, shape index: {}]
  %s1 = inlined_call_operand.hbm [shape: f32[16,32], index: 1, kind: input, shape index: {}]
  %s2 = inlined_call_operand.hbm [shape: f32[32,144], index: 2, kind: input, shape index: {}]
  %s3 = inlined_call_operand.vmem [shape: f32[1,144], index: 3, kind: input, shape index: {}]
  %s4 = inlined_call_operand.hbm [shape: f32[32,64], index: 4, kind: input, shape index: {}]
  %s5 = inlined_call_operand.vmem [shape: f32[1,64], index: 5, kind: input, shape index: {}]
  %s6 = inlined_call_operand.hbm [shape: f32[32,96], index: 6, kind: input, shape index: {}]
  %s7 = inlined_call_operand.vmem [shape: f32[1,32], index: 7, kind: input, shape index: {}]
  %s8 = inlined_call_operand.vmem [shape: f32[8,32], index: 8, kind: input, shape index: {}]
  %s9 = inlined_call_operand.hbm [shape: f32[2,32], index: 9, kind: output, shape index: {0}]
  %s10 = inlined_call_operand.hbm [shape: f32[2,16,32], index: 10, kind: output, shape index: {1}]
  %11 = xla_tuple %s9, %s10
  %s12 = sld [smem:[#allocation0]]
  $region74: #{tpu_custom_call.1} parent=0
    _
  %s14 = ssub.s32 1, %s12
  %s15 = scalar_select 0, %s14, %s12
  $region1: #{tpu_custom_call.1} parent=0
    #allocation2 [shape = 'u8[1024]{0}', space=vmem, size = 0x400, scoped, tag = 'input window, operand 0, single buffered']
    #allocation3 [shape = 's32[1]{0}', space=sflag, size = 0x4, scoped, tag = 'scoped memory for tpu_custom_call.1']
    #allocation4 [shape = 's32[1]{0}', space=sflag, size = 0x4, scoped, tag = 'scoped memory for tpu_custom_call.1']
    #allocation5 [shape = 'u8[8192]{0}', space=vmem, size = 0x2000, scoped, tag = 'input window, operand 1, single buffered']
    #allocation6 [shape = 's32[1]{0}', space=sflag, size = 0x4, scoped, tag = 'scoped memory for tpu_custom_call.1']
    #allocation7 [shape = 'u8[32768]{0}', space=vmem, size = 0x8000, scoped, tag = 'input window, operand 2, single buffered']
    #allocation8 [shape = 'u8[16384]{0}', space=vmem, size = 0x4000, scoped, tag = 'input window, operand 4, single buffered']
    #allocation9 [shape = 's32[1]{0}', space=sflag, size = 0x4, scoped, tag = 'scoped memory for tpu_custom_call.1']
    #allocation10 [shape = 'u8[16384]{0}', space=vmem, size = 0x4000, scoped, tag = 'input window, operand 6, single buffered']
    #allocation11 [shape = 'u8[1024]{0}', space=vmem, size = 0x400, scoped, tag = 'output window, operand 0, single buffered']
    #allocation12 [shape = 'u8[16384]{0}', space=vmem, size = 0x4000, scoped, tag = 'output window, operand 1, single buffered']
    #allocation13 [shape = 's32[1]{0}', space=sflag, size = 0x4, scoped, tag = 'scoped memory for tpu_custom_call.1']
    %16 = vsyncpa [#allocation3], 0
    %17 = vsyncpa [#allocation6], 0
    %18 = vsyncpa [#allocation9], 0
    %19 = vsyncpa [#allocation4], 0
    %20 = vsyncpa [#allocation13], 0
    // Predicated region
    $region2: #{tpu_custom_call.1} parent=1 // pred_check
      _
    $region3: #{tpu_custom_call.1} parent=1 // pred_check_branch
      %22 = sbr.rel (0) target = $region5
    $region4: #{tpu_custom_call.1} parent=1 // pred_region
      %s24 = ssub.s32 32, 32
      %25 = vsyncadd [#allocation3], %s24
      %s27 = sshll.u32 [#allocation2], 4
      %s28 = int_to_ptr.vmem [resolvable:$true] %s27
      %30 = dma.hbm_to_vmem [thread:$0]  %s0, 32, %s28, [#allocation3]
    $region5: #{tpu_custom_call.1} parent=1 // pred_fallthru
      _
    // Predicated region
    $region6: #{tpu_custom_call.1} parent=1 // pred_check
      _
    $region7: #{tpu_custom_call.1} parent=1 // pred_check_branch
      %32 = sbr.rel (0) target = $region9
    $region8: #{tpu_custom_call.1} parent=1 // pred_region
      %s34 = ssub.s32 256, 256
      %35 = vsyncadd [#allocation6], %s34
      %s36 = sshll.u32 [#allocation5], 4
      %s37 = int_to_ptr.vmem [resolvable:$true] %s36
      %42 = dma.hbm_to_vmem [thread:$0]  %s1, 256, %s37, [#allocation6], 128, 128, 8
    $region9: #{tpu_custom_call.1} parent=1 // pred_fallthru
      _
    // Predicated region
    $region10: #{tpu_custom_call.1} parent=1 // pred_check
      _
    $region11: #{tpu_custom_call.1} parent=1 // pred_check_branch
      %44 = sbr.rel (0) target = $region13
    $region12: #{tpu_custom_call.1} parent=1 // pred_region
      %s46 = ssub.s32 1024, 1024
      %47 = vsyncadd [#allocation6], %s46
      %s48 = sshll.u32 [#allocation7], 4
      %s49 = int_to_ptr.vmem [resolvable:$true] %s48
      %54 = dma.hbm_to_vmem [thread:$0]  %s2, 1024, %s49, [#allocation6], 256, 256, 16
    $region13: #{tpu_custom_call.1} parent=1 // pred_fallthru
      _
    // Predicated region
    $region14: #{tpu_custom_call.1} parent=1 // pred_check
      _
    $region15: #{tpu_custom_call.1} parent=1 // pred_check_branch
      %56 = sbr.rel (0) target = $region17
    $region16: #{tpu_custom_call.1} parent=1 // pred_region
      _
    $region17: #{tpu_custom_call.1} parent=1 // pred_fallthru
      _
    // Predicated region
    $region18: #{tpu_custom_call.1} parent=1 // pred_check
      _
    $region19: #{tpu_custom_call.1} parent=1 // pred_check_branch
      %58 = sbr.rel (0) target = $region21
    $region20: #{tpu_custom_call.1} parent=1 // pred_region
      %s60 = ssub.s32 512, 512
      %61 = vsyncadd [#allocation9], %s60
      %s62 = sshll.u32 [#allocation8], 4
      %s63 = int_to_ptr.vmem [resolvable:$true] %s62
      %68 = dma.hbm_to_vmem [thread:$0]  %s4, 512, %s63, [#allocation9], 128, 128, 8
    $region21: #{tpu_custom_call.1} parent=1 // pred_fallthru
      _
    // Predicated region
    $region22: #{tpu_custom_call.1} parent=1 // pred_check
      _
    $region23: #{tpu_custom_call.1} parent=1 // pred_check_branch
      %70 = sbr.rel (0) target = $region25
    $region24: #{tpu_custom_call.1} parent=1 // pred_region
      _
    $region25: #{tpu_custom_call.1} parent=1 // pred_fallthru
      _
    // Predicated region
    $region26: #{tpu_custom_call.1} parent=1 // pred_check
      _
    $region27: #{tpu_custom_call.1} parent=1 // pred_check_branch
      %72 = sbr.rel (0) target = $region29
    $region28: #{tpu_custom_call.1} parent=1 // pred_region
      %s74 = ssub.s32 512, 512
      %75 = vsyncadd [#allocation9], %s74
      %s76 = sshll.u32 [#allocation10], 4
      %s77 = int_to_ptr.vmem [resolvable:$true] %s76
      %82 = dma.hbm_to_vmem [thread:$0]  %s6, 512, %s77, [#allocation9], 128, 128, 8
    $region29: #{tpu_custom_call.1} parent=1 // pred_fallthru
      _
    // Predicated region
    $region30: #{tpu_custom_call.1} parent=1 // pred_check
      _
    $region31: #{tpu_custom_call.1} parent=1 // pred_check_branch
      %84 = sbr.rel (0) target = $region33
    $region32: #{tpu_custom_call.1} parent=1 // pred_region
      _
    $region33: #{tpu_custom_call.1} parent=1 // pred_fallthru
      _
    // Predicated region
    $region34: #{tpu_custom_call.1} parent=1 // pred_check
      _
    $region35: #{tpu_custom_call.1} parent=1 // pred_check_branch
      %86 = sbr.rel (0) target = $region37
    $region36: #{tpu_custom_call.1} parent=1 // pred_region
      _
    $region37: #{tpu_custom_call.1} parent=1 // pred_fallthru
      _
    // Predicated region
    $region38: #{tpu_custom_call.1} parent=1 // pred_check
      _
    $region39: #{tpu_custom_call.1} parent=1 // pred_check_branch
      %88 = sbr.rel (0) target = $region41
    $region40: #{tpu_custom_call.1} parent=1 // pred_region
      %89 = dma.done [#allocation3], 32
    $region41: #{tpu_custom_call.1} parent=1 // pred_fallthru
      _
    // Predicated region
    $region42: #{tpu_custom_call.1} parent=1 // pred_check
      _
    $region43: #{tpu_custom_call.1} parent=1 // pred_check_branch
      %91 = sbr.rel (0) target = $region45
    $region44: #{tpu_custom_call.1} parent=1 // pred_region
      %92 = dma.done [#allocation6], 256
    $region45: #{tpu_custom_call.1} parent=1 // pred_fallthru
      _
    // Predicated region
    $region46: #{tpu_custom_call.1} parent=1 // pred_check
      _
    $region47: #{tpu_custom_call.1} parent=1 // pred_check_branch
      %94 = sbr.rel (0) target = $region49
    $region48: #{tpu_custom_call.1} parent=1 // pred_region
      %95 = dma.done [#allocation6], 1024
    $region49: #{tpu_custom_call.1} parent=1 // pred_fallthru
      _
    // Predicated region
    $region50: #{tpu_custom_call.1} parent=1 // pred_check
      _
    $region51: #{tpu_custom_call.1} parent=1 // pred_check_branch
      %97 = sbr.rel (0) target = $region53
    $region52: #{tpu_custom_call.1} parent=1 // pred_region
      %98 = dma.done [#allocation9], 512
    $region53: #{tpu_custom_call.1} parent=1 // pred_fallthru
      _
    // Predicated region
    $region54: #{tpu_custom_call.1} parent=1 // pred_check
      _
    $region55: #{tpu_custom_call.1} parent=1 // pred_check_branch
      %100 = sbr.rel (0) target = $region57
    $region56: #{tpu_custom_call.1} parent=1 // pred_region
      %101 = dma.done [#allocation9], 512
    $region57: #{tpu_custom_call.1} parent=1 // pred_fallthru
      _
    %v102 = vld [vmem:[#allocation2] sm:$0x3]
    %v103 = vld [vmem:[#allocation7] sm:$0xff]
    %v104 = vld [vmem:[#allocation7 + $0x8] sm:$0xff]
    %v105 = vld [vmem:[#allocation7 + $0x10] sm:$0xff]
    %v106 = vld [vmem:[#allocation7 + $0x18] sm:$0xff]
    %v107 = vld [vmem:[#allocation7 + $0x20] sm:$0xff]
    %v108 = vld [vmem:[#allocation7 + $0x28] sm:$0xff]
    %v109 = vld [vmem:[#allocation7 + $0x30] sm:$0xff]
    %v110 = vld [vmem:[#allocation7 + $0x38] sm:$0xff]
    %v111 = vld [vmem:[%s3] sm:$0x3]
    %v112 = vld [vmem:[#allocation8] sm:$0xff]
    %v113 = vld [vmem:[#allocation8 + $0x8] sm:$0xff]
    %v114 = vld [vmem:[#allocation8 + $0x10] sm:$0xff]
    %v115 = vld [vmem:[#allocation8 + $0x18] sm:$0xff]
    %v116 = vld [vmem:[%s5] sm:$0x1]
    %v117 = vld [vmem:[#allocation10] sm:$0xff]
    %v118 = vld [vmem:[#allocation10 + $0x8] sm:$0xff]
    %v119 = vld [vmem:[#allocation10 + $0x10] sm:$0xff]
    %v120 = vld [vmem:[#allocation10 + $0x18] sm:$0xff]
    %v121 = vld [vmem:[%s7] sm:$0x1]
    %v122 = vld [vmem:[%s8] sm:$0xff]
    %v124 = vlaneseq
    %v125 = vshrl.u32 %v124, 7
    %v126 = vsub.s32 0, %v125
    %v127 = vrot.slane %v111, %v126
    %v128 = vlaneseq
    %v129 = vshrl.u32 %v128, 7
    %v130 = vsub.s32 1, %v129
    %v131 = vrot.slane %v111, %v130
    %vm134 = vcmask 261120
    %v136 = vsel %vm134, %v102, 0
    %138 = vmatprep.subr.mxu0 %v104
    %139 = vmatpush1.msra.mxu0 %v103
    %140 = vmatprep.subr.mxu0 %v106
    %141 = vmatpush1.msra.mxu0 %v105
    %142 = vmatprep.subr.mxu0 %v108
    %143 = vmatpush1.msra.mxu0 %v107
    %144 = vmatprep.subr.mxu0 %v110
    %145 = vmatpush1.msra.mxu0 %v109
    %146 = vmatprep.subr.mxu0 0.0
    %147 = vmatpush1.msra.mxu0 0.0
    %148 = vmatprep.subr.mxu0 0.0
    %149 = vmatpush1.msra.mxu0 0.0
    %150 = vmatprep.subr.mxu0 0.0
    %151 = vmatpush1.msra.mxu0 0.0
    %152 = vmatprep.subr.mxu0 0.0
    %153 = vmatpush1.msra.mxu0 0.0
    %154 = vmatprep.subr.mxu0 0.0
    %155 = vmatpush1.msra.mxu0 0.0
    %156 = vmatprep.subr.mxu0 0.0
    %157 = vmatpush1.msra.mxu0 0.0
    %158 = vmatprep.subr.mxu0 0.0
    %159 = vmatpush1.msra.mxu0 0.0
    %160 = vmatprep.subr.mxu0 0.0
    %161 = vmatpush1.msra.mxu0 0.0
    %162 = vmatprep.subr.mxu0 0.0
    %163 = vmatpush1.msra.mxu0 0.0
    %164 = vmatprep.subr.mxu0 0.0
    %165 = vmatpush1.msra.mxu0 0.0
    %166 = vmatprep.subr.mxu0 0.0
    %167 = vmatpush1.msra.mxu0 0.0
    %168 = vmatprep.subr.mxu0 0.0
    %169 = vmatpush1.msra.mxu0 0.0
    %170 = vmatprep.subr.mxu0 0.0
    %171 = vmatpush1.msra.mxu0 0.0
    %172 = vmatprep.subr.mxu0 0.0
    %173 = vmatpush1.msra.mxu0 0.0
    %174 = vmatprep.subr.mxu0 0.0
    %175 = vmatpush1.msra.mxu0 0.0
    %176 = vmatprep.subr.mxu0 0.0
    %177 = vmatpush1.msra.mxu0 0.0
    %178 = vmatprep.subr.mxu0 0.0
    %179 = vmatpush1.msra.mxu0 0.0
    %180 = vmatprep.subr.mxu0 0.0
    %181 = vmatpush1.msra.mxu0 0.0
    %182 = vmatprep.subr.mxu0 0.0
    %183 = vmatpush1.msra.mxu0 0.0
    %184 = vmatprep.subr.mxu0 0.0
    %185 = vmatpush1.msra.mxu0 0.0
    %186 = vmatprep.subr.mxu0 0.0
    %187 = vmatpush1.msra.mxu0 0.0
    %188 = vmatprep.subr.mxu0 0.0
    %189 = vmatpush1.msra.mxu0 0.0
    %190 = vmatprep.subr.mxu0 0.0
    %191 = vmatpush1.msra.mxu0 0.0
    %192 = vmatprep.subr.mxu0 0.0
    %193 = vmatpush1.msra.mxu0 0.0
    %194 = vmatprep.subr.mxu0 0.0
    %195 = vmatpush1.msra.mxu0 0.0
    %196 = vmatprep.subr.mxu0 0.0
    %197 = vmatpush1.msra.mxu0 0.0
    %198 = vmatprep.subr.mxu0 0.0
    %199 = vmatpush1.msra.mxu0 0.0
    %200 = vmatprep.subr.mxu0 0.0
    %201 = vmatpush1.msra.mxu0 0.0
    %202 = vmatprep.mubr.f32.mxu0 0.0
    %203 = vmatmul.mubr.f32.gmra.mrb[0].mxu0 %v136
    %v204 = vpop.f32.mrb[0].mxu0
    %v205 = vadd.f32 %v127, %v204
    %v206 = vpop.f32.mrb[0].mxu0
    %v207 = vadd.f32 %v131, %v206
    %208 = vdwg.mxu0
    %v209 = vtanh.pop %v205
    %v212 = vunpack.c.l.s4 1966171168
    %v213 = vunpack.c.0.s8 %v212
    %v214 = vlaneseq
    %v215 = vshrl.u32 %v214, 7
    %v216 = vsub.s32 %v213, %v215
    %v217 = vrot.slane %v205, %v216
    %v218 = vcombine.high %v217, %v217
    %v220 = vunpack.c.l.s4 1966171168
    %v221 = vunpack.c.0.s8 %v220
    %v222 = vlaneseq
    %v223 = vshrl.u32 %v222, 7
    %v224 = vsub.s32 %v221, %v223
    %v225 = vrot.slane %v217, %v224
    %v227 = vunpack.c.l.s4 1966171168
    %v228 = vunpack.c.0.s8 %v227
    %v229 = vlaneseq
    %v230 = vshrl.u32 %v229, 7
    %v231 = vsub.s32 %v228, %v230
    %v232 = vrot.slane %v218, %v231
    %v233 = vlaneseq
    %v234 = vshrl.u32 %v233, 7
    %v235 = vsub.s32 0, %v234
    %v236 = vrot.slane %v225, %v235
    %v237 = vlaneseq
    %v238 = vshrl.u32 %v237, 7
    %v239 = vsub.s32 0, %v238
    %v240 = vrot.slane %v232, %v239
    %v243 = vmul.f32 %v236, %v122
    %v244 = vmul.f32 %v240, %v122
    %v245 = vld [vmem:[#allocation5] sm:$0xff]
    %v246 = vld [vmem:[#allocation5 + $0x8] sm:$0xff]
    %v248 = vlaneseq
    %v249 = vshrl.u32 %v248, 7
    %v250 = vsub.s32 0, %v249
    %v251 = vrot.slane %v116, %v250
    %v254 = vsel %vm134, %v245, 0
    %v257 = vsel %vm134, %v246, 0
    %259 = vmatprep.subr.mxu0 0.0
    %260 = vmatpush1.msra.mxu0 %v112
    %261 = vmatprep.subr.mxu0 0.0
    %262 = vmatpush1.msra.mxu0 %v113
    %263 = vmatprep.subr.mxu0 0.0
    %264 = vmatpush1.msra.mxu0 %v114
    %265 = vmatprep.subr.mxu0 0.0
    %266 = vmatpush1.msra.mxu0 %v115
    %267 = vmatprep.subr.mxu0 0.0
    %268 = vmatpush1.msra.mxu0 0.0
    %269 = vmatprep.subr.mxu0 0.0
    %270 = vmatpush1.msra.mxu0 0.0
    %271 = vmatprep.subr.mxu0 0.0
    %272 = vmatpush1.msra.mxu0 0.0
    %273 = vmatprep.subr.mxu0 0.0
    %274 = vmatpush1.msra.mxu0 0.0
    %275 = vmatprep.subr.mxu0 0.0
    %276 = vmatpush1.msra.mxu0 0.0
    %277 = vmatprep.subr.mxu0 0.0
    %278 = vmatpush1.msra.mxu0 0.0
    %279 = vmatprep.subr.mxu0 0.0
    %280 = vmatpush1.msra.mxu0 0.0
    %281 = vmatprep.subr.mxu0 0.0
    %282 = vmatpush1.msra.mxu0 0.0
    %283 = vmatprep.subr.mxu0 0.0
    %284 = vmatpush1.msra.mxu0 0.0
    %285 = vmatprep.subr.mxu0 0.0
    %286 = vmatpush1.msra.mxu0 0.0
    %287 = vmatprep.subr.mxu0 0.0
    %288 = vmatpush1.msra.mxu0 0.0
    %289 = vmatprep.subr.mxu0 0.0
    %290 = vmatpush1.msra.mxu0 0.0
    %291 = vmatprep.subr.mxu0 0.0
    %292 = vmatpush1.msra.mxu0 0.0
    %293 = vmatprep.subr.mxu0 0.0
    %294 = vmatpush1.msra.mxu0 0.0
    %295 = vmatprep.subr.mxu0 0.0
    %296 = vmatpush1.msra.mxu0 0.0
    %297 = vmatprep.subr.mxu0 0.0
    %298 = vmatpush1.msra.mxu0 0.0
    %299 = vmatprep.subr.mxu0 0.0
    %300 = vmatpush1.msra.mxu0 0.0
    %301 = vmatprep.subr.mxu0 0.0
    %302 = vmatpush1.msra.mxu0 0.0
    %303 = vmatprep.subr.mxu0 0.0
    %304 = vmatpush1.msra.mxu0 0.0
    %305 = vmatprep.subr.mxu0 0.0
    %306 = vmatpush1.msra.mxu0 0.0
    %307 = vmatprep.subr.mxu0 0.0
    %308 = vmatpush1.msra.mxu0 0.0
    %309 = vmatprep.subr.mxu0 0.0
    %310 = vmatpush1.msra.mxu0 0.0
    %311 = vmatprep.subr.mxu0 0.0
    %312 = vmatpush1.msra.mxu0 0.0
    %313 = vmatprep.subr.mxu0 0.0
    %314 = vmatpush1.msra.mxu0 0.0
    %315 = vmatprep.subr.mxu0 0.0
    %316 = vmatpush1.msra.mxu0 0.0
    %317 = vmatprep.subr.mxu0 0.0
    %318 = vmatpush1.msra.mxu0 0.0
    %319 = vmatprep.subr.mxu0 0.0
    %320 = vmatpush1.msra.mxu0 0.0
    %321 = vmatprep.subr.mxu0 0.0
    %322 = vmatpush1.msra.mxu0 0.0
    %323 = vmatprep.mubr.f32.mxu0 0.0
    %324 = vmatmul.mubr.f32.gmra.mrb[0].mxu0 %v254
    %v325 = vpop.f32.mrb[0].mxu0
    %v326 = vadd.f32 %v251, %v325
    %v327 = vpop.f32.mrb[0].mxu0
    %328 = vmatprep.mubr.f32.mxu0 0.0
    %329 = vmatmul.mubr.f32.gmra.mrb[0].mxu0 %v257
    %v330 = vpop.f32.mrb[0].mxu0
    %v331 = vadd.f32 %v251, %v330
    %v332 = vpop.f32.mrb[0].mxu0
    %333 = vdwg.mxu0
    %v335 = vsel %vm134, %v243, 0
    %v338 = vsel %vm134, %v244, 0
    %v341 = vsel %vm134, %v326, 0
    %v344 = vsel %vm134, %v331, 0
    %346 = vmatprep.subr.mxu0 0.0
    %347 = vmatpush1.xpose.msra.mxu0 %v341
    %348 = vmatprep.subr.mxu0 0.0
    %349 = vmatpush1.xpose.msra.mxu0 %v344
    %350 = vmatprep.subr.mxu0 0.0
    %351 = vmatpush1.xpose.msra.mxu0 0.0
    %352 = vmatprep.subr.mxu0 0.0
    %353 = vmatpush1.xpose.msra.mxu0 0.0
    %354 = vmatprep.subr.mxu0 0.0
    %355 = vmatpush1.xpose.msra.mxu0 0.0
    %356 = vmatprep.subr.mxu0 0.0
    %357 = vmatpush1.xpose.msra.mxu0 0.0
    %358 = vmatprep.subr.mxu0 0.0
    %359 = vmatpush1.xpose.msra.mxu0 0.0
    %360 = vmatprep.subr.mxu0 0.0
    %361 = vmatpush1.xpose.msra.mxu0 0.0
    %362 = vmatprep.subr.mxu0 0.0
    %363 = vmatpush1.xpose.msra.mxu0 0.0
    %364 = vmatprep.subr.mxu0 0.0
    %365 = vmatpush1.xpose.msra.mxu0 0.0
    %366 = vmatprep.subr.mxu0 0.0
    %367 = vmatpush1.xpose.msra.mxu0 0.0
    %368 = vmatprep.subr.mxu0 0.0
    %369 = vmatpush1.xpose.msra.mxu0 0.0
    %370 = vmatprep.subr.mxu0 0.0
    %371 = vmatpush1.xpose.msra.mxu0 0.0
    %372 = vmatprep.subr.mxu0 0.0
    %373 = vmatpush1.xpose.msra.mxu0 0.0
    %374 = vmatprep.subr.mxu0 0.0
    %375 = vmatpush1.xpose.msra.mxu0 0.0
    %376 = vmatprep.subr.mxu0 0.0
    %377 = vmatpush1.xpose.msra.mxu0 0.0
    %378 = vmatprep.subr.mxu0 0.0
    %379 = vmatpush1.xpose.msra.mxu0 0.0
    %380 = vmatprep.subr.mxu0 0.0
    %381 = vmatpush1.xpose.msra.mxu0 0.0
    %382 = vmatprep.subr.mxu0 0.0
    %383 = vmatpush1.xpose.msra.mxu0 0.0
    %384 = vmatprep.subr.mxu0 0.0
    %385 = vmatpush1.xpose.msra.mxu0 0.0
    %386 = vmatprep.subr.mxu0 0.0
    %387 = vmatpush1.xpose.msra.mxu0 0.0
    %388 = vmatprep.subr.mxu0 0.0
    %389 = vmatpush1.xpose.msra.mxu0 0.0
    %390 = vmatprep.subr.mxu0 0.0
    %391 = vmatpush1.xpose.msra.mxu0 0.0
    %392 = vmatprep.subr.mxu0 0.0
    %393 = vmatpush1.xpose.msra.mxu0 0.0
    %394 = vmatprep.subr.mxu0 0.0
    %395 = vmatpush1.xpose.msra.mxu0 0.0
    %396 = vmatprep.subr.mxu0 0.0
    %397 = vmatpush1.xpose.msra.mxu0 0.0
    %398 = vmatprep.subr.mxu0 0.0
    %399 = vmatpush1.xpose.msra.mxu0 0.0
    %400 = vmatprep.subr.mxu0 0.0
    %401 = vmatpush1.xpose.msra.mxu0 0.0
    %402 = vmatprep.subr.mxu0 0.0
    %403 = vmatpush1.xpose.msra.mxu0 0.0
    %404 = vmatprep.subr.mxu0 0.0
    %405 = vmatpush1.xpose.msra.mxu0 0.0
    %406 = vmatprep.subr.mxu0 0.0
    %407 = vmatpush1.xpose.msra.mxu0 0.0
    %408 = vmatprep.subr.mxu0 0.0
    %409 = vmatpush1.xpose.msra.mxu0 0.0
    %410 = vmatprep.mubr.f32.mxu0 0.0
    %411 = vmatmul.mubr.f32.gmra.mrb[0].mxu0 %v335
    %v412 = vpop.f32.mrb[0].mxu0
    %v413 = vadd.f32 0.0, %v412
    %v414 = vpop.f32.mrb[0].mxu0
    %415 = vmatprep.mubr.f32.mxu0 0.0
    %416 = vmatmul.mubr.f32.gmra.mrb[0].mxu0 %v338
    %v417 = vpop.f32.mrb[0].mxu0
    %v418 = vadd.f32 0.0, %v417
    %v419 = vpop.f32.mrb[0].mxu0
    %420 = vdwg.mxu0
    %vm421 = vcmask 130048
    %v422 = vsel %vm421, %v413, -inf
    %423 = vmax.xlane.f32.xlu0 %v422
    %v424 = vpop.xlane.xlu0 %423
    %v425 = vsel %vm421, %v418, -inf
    %426 = vmax.xlane.f32.xlu0 %v425
    %v427 = vpop.xlane.xlu0 %426
    %v428 = vsub.f32 %v413, %v424
    %v429 = vsub.f32 %v418, %v427
    %v430 = vmul.f32 %v428, 1.442695
    %v431 = vpow.pop %v430
    %v432 = vmul.f32 %v429, 1.442695
    %v433 = vpow.pop %v432
    %v434 = vsel %vm421, %v431, 0.0
    %435 = vadd.xlane.f32.xlu0 %v434
    %v436 = vpop.xlane.xlu0 %435
    %v437 = vsel %vm421, %v433, 0.0
    %438 = vadd.xlane.f32.xlu0 %v437
    %v439 = vpop.xlane.xlu0 %438
    %v440 = vrcp.pop %v436
    %v441 = vrcp.pop %v439
    %v442 = vmul.f32 %v431, %v440
    %v443 = vmul.f32 %v433, %v441
    %444 = vrot.lane.b32.xlu0 %v326, 96
    %v445 = vpop.permute.xlu0 %444
    %446 = vrot.lane.b32.xlu0 %v331, 96
    %v447 = vpop.permute.xlu0 %446
    %v451 = vsel %vm421, %v442, 0
    %v454 = vsel %vm421, %v443, 0
    %456 = vmatprep.subr.mxu0 0.0
    %457 = vmatpush1.msra.mxu0 %v445
    %458 = vmatprep.subr.mxu0 0.0
    %459 = vmatpush1.msra.mxu0 %v447
    %460 = vmatprep.subr.mxu0 0.0
    %461 = vmatpush1.msra.mxu0 0.0
    %462 = vmatprep.subr.mxu0 0.0
    %463 = vmatpush1.msra.mxu0 0.0
    %464 = vmatprep.subr.mxu0 0.0
    %465 = vmatpush1.msra.mxu0 0.0
    %466 = vmatprep.subr.mxu0 0.0
    %467 = vmatpush1.msra.mxu0 0.0
    %468 = vmatprep.subr.mxu0 0.0
    %469 = vmatpush1.msra.mxu0 0.0
    %470 = vmatprep.subr.mxu0 0.0
    %471 = vmatpush1.msra.mxu0 0.0
    %472 = vmatprep.subr.mxu0 0.0
    %473 = vmatpush1.msra.mxu0 0.0
    %474 = vmatprep.subr.mxu0 0.0
    %475 = vmatpush1.msra.mxu0 0.0
    %476 = vmatprep.subr.mxu0 0.0
    %477 = vmatpush1.msra.mxu0 0.0
    %478 = vmatprep.subr.mxu0 0.0
    %479 = vmatpush1.msra.mxu0 0.0
    %480 = vmatprep.subr.mxu0 0.0
    %481 = vmatpush1.msra.mxu0 0.0
    %482 = vmatprep.subr.mxu0 0.0
    %483 = vmatpush1.msra.mxu0 0.0
    %484 = vmatprep.subr.mxu0 0.0
    %485 = vmatpush1.msra.mxu0 0.0
    %486 = vmatprep.subr.mxu0 0.0
    %487 = vmatpush1.msra.mxu0 0.0
    %488 = vmatprep.subr.mxu0 0.0
    %489 = vmatpush1.msra.mxu0 0.0
    %490 = vmatprep.subr.mxu0 0.0
    %491 = vmatpush1.msra.mxu0 0.0
    %492 = vmatprep.subr.mxu0 0.0
    %493 = vmatpush1.msra.mxu0 0.0
    %494 = vmatprep.subr.mxu0 0.0
    %495 = vmatpush1.msra.mxu0 0.0
    %496 = vmatprep.subr.mxu0 0.0
    %497 = vmatpush1.msra.mxu0 0.0
    %498 = vmatprep.subr.mxu0 0.0
    %499 = vmatpush1.msra.mxu0 0.0
    %500 = vmatprep.subr.mxu0 0.0
    %501 = vmatpush1.msra.mxu0 0.0
    %502 = vmatprep.subr.mxu0 0.0
    %503 = vmatpush1.msra.mxu0 0.0
    %504 = vmatprep.subr.mxu0 0.0
    %505 = vmatpush1.msra.mxu0 0.0
    %506 = vmatprep.subr.mxu0 0.0
    %507 = vmatpush1.msra.mxu0 0.0
    %508 = vmatprep.subr.mxu0 0.0
    %509 = vmatpush1.msra.mxu0 0.0
    %510 = vmatprep.subr.mxu0 0.0
    %511 = vmatpush1.msra.mxu0 0.0
    %512 = vmatprep.subr.mxu0 0.0
    %513 = vmatpush1.msra.mxu0 0.0
    %514 = vmatprep.subr.mxu0 0.0
    %515 = vmatpush1.msra.mxu0 0.0
    %516 = vmatprep.subr.mxu0 0.0
    %517 = vmatpush1.msra.mxu0 0.0
    %518 = vmatprep.subr.mxu0 0.0
    %519 = vmatpush1.msra.mxu0 0.0
    %520 = vmatprep.mubr.f32.mxu0 0.0
    %521 = vmatmul.mubr.f32.gmra.mrb[0].mxu0 %v451
    %v522 = vpop.f32.mrb[0].mxu0
    %v523 = vadd.f32 0.0, %v522
    %v524 = vpop.f32.mrb[0].mxu0
    %525 = vmatprep.mubr.f32.mxu0 0.0
    %526 = vmatmul.mubr.f32.gmra.mrb[0].mxu0 %v454
    %v527 = vpop.f32.mrb[0].mxu0
    %v528 = vadd.f32 0.0, %v527
    %v529 = vpop.f32.mrb[0].mxu0
    %530 = vdwg.mxu0
    %v531 = vmul.f32 %v523, %v122
    %v532 = vmul.f32 %v528, %v122
    %v533 = vsel %vm134, %v531, 0.0
    %v534 = vrot.slane %v533, 4
    %v535 = vadd.f32 %v533, %v534
    %v536 = vrot.slane %v535, 2
    %v537 = vadd.f32 %v535, %v536
    %v538 = vrot.slane %v537, 1
    %v539 = vadd.f32 %v537, %v538
    %v540 = vsel %vm134, %v532, 0.0
    %v541 = vrot.slane %v540, 4
    %v542 = vadd.f32 %v540, %v541
    %v543 = vrot.slane %v542, 2
    %v544 = vadd.f32 %v542, %v543
    %v545 = vrot.slane %v544, 1
    %v546 = vadd.f32 %v544, %v545
    %vm549 = vcmask 1041409
    %v550 = vsel %vm549, %v546, %v539
    %v551 = vsel %vm134, %v550, 0
    %553 = vmatprep.subr.mxu0 0.0
    %554 = vmatpush1.msra.mxu0 %v117
    %555 = vmatprep.subr.mxu0 0.0
    %556 = vmatpush1.msra.mxu0 %v118
    %557 = vmatprep.subr.mxu0 0.0
    %558 = vmatpush1.msra.mxu0 %v119
    %559 = vmatprep.subr.mxu0 0.0
    %560 = vmatpush1.msra.mxu0 %v120
    %561 = vmatprep.subr.mxu0 0.0
    %562 = vmatpush1.msra.mxu0 0.0
    %563 = vmatprep.subr.mxu0 0.0
    %564 = vmatpush1.msra.mxu0 0.0
    %565 = vmatprep.subr.mxu0 0.0
    %566 = vmatpush1.msra.mxu0 0.0
    %567 = vmatprep.subr.mxu0 0.0
    %568 = vmatpush1.msra.mxu0 0.0
    %569 = vmatprep.subr.mxu0 0.0
    %570 = vmatpush1.msra.mxu0 0.0
    %571 = vmatprep.subr.mxu0 0.0
    %572 = vmatpush1.msra.mxu0 0.0
    %573 = vmatprep.subr.mxu0 0.0
    %574 = vmatpush1.msra.mxu0 0.0
    %575 = vmatprep.subr.mxu0 0.0
    %576 = vmatpush1.msra.mxu0 0.0
    %577 = vmatprep.subr.mxu0 0.0
    %578 = vmatpush1.msra.mxu0 0.0
    %579 = vmatprep.subr.mxu0 0.0
    %580 = vmatpush1.msra.mxu0 0.0
    %581 = vmatprep.subr.mxu0 0.0
    %582 = vmatpush1.msra.mxu0 0.0
    %583 = vmatprep.subr.mxu0 0.0
    %584 = vmatpush1.msra.mxu0 0.0
    %585 = vmatprep.subr.mxu0 0.0
    %586 = vmatpush1.msra.mxu0 0.0
    %587 = vmatprep.subr.mxu0 0.0
    %588 = vmatpush1.msra.mxu0 0.0
    %589 = vmatprep.subr.mxu0 0.0
    %590 = vmatpush1.msra.mxu0 0.0
    %591 = vmatprep.subr.mxu0 0.0
    %592 = vmatpush1.msra.mxu0 0.0
    %593 = vmatprep.subr.mxu0 0.0
    %594 = vmatpush1.msra.mxu0 0.0
    %595 = vmatprep.subr.mxu0 0.0
    %596 = vmatpush1.msra.mxu0 0.0
    %597 = vmatprep.subr.mxu0 0.0
    %598 = vmatpush1.msra.mxu0 0.0
    %599 = vmatprep.subr.mxu0 0.0
    %600 = vmatpush1.msra.mxu0 0.0
    %601 = vmatprep.subr.mxu0 0.0
    %602 = vmatpush1.msra.mxu0 0.0
    %603 = vmatprep.subr.mxu0 0.0
    %604 = vmatpush1.msra.mxu0 0.0
    %605 = vmatprep.subr.mxu0 0.0
    %606 = vmatpush1.msra.mxu0 0.0
    %607 = vmatprep.subr.mxu0 0.0
    %608 = vmatpush1.msra.mxu0 0.0
    %609 = vmatprep.subr.mxu0 0.0
    %610 = vmatpush1.msra.mxu0 0.0
    %611 = vmatprep.subr.mxu0 0.0
    %612 = vmatpush1.msra.mxu0 0.0
    %613 = vmatprep.subr.mxu0 0.0
    %614 = vmatpush1.msra.mxu0 0.0
    %615 = vmatprep.subr.mxu0 0.0
    %616 = vmatpush1.msra.mxu0 0.0
    %617 = vmatprep.mubr.f32.mxu0 0.0
    %618 = vmatmul.mubr.f32.gmra.mrb[0].mxu0 %v551
    %v619 = vpop.f32.mrb[0].mxu0
    %v620 = vadd.f32 0.0, %v619
    %v621 = vpop.f32.mrb[0].mxu0
    %622 = vdwg.mxu0
    %v624 = vlaneseq
    %v625 = vshrl.u32 %v624, 7
    %v626 = vsub.s32 0, %v625
    %v627 = vrot.slane %v121, %v626
    %v629 = vadd.f32 %v620, %v627
    %vm630 = vcmask 254976
    %631 = vst.msk [vmem:[#allocation11] sm:$0x3] %vm630, %v629
    %633 = vrot.lane.b32.xlu0 %v620, 48
    %v634 = vpop.permute.xlu0 %633
    %v636 = vadd.f32 %v205, %v634
    %v637 = vadd.f32 %v207, %v634
    %v638 = vxor.u32 %v636, 2147483648
    %v639 = vxor.u32 %v637, 2147483648
    %v640 = vmul.f32 %v638, 1.442695
    %v641 = vpow.pop %v640
    %v642 = vmul.f32 %v639, 1.442695
    %v643 = vpow.pop %v642
    %v644 = vadd.f32 %v641, 1.0
    %v645 = vadd.f32 %v643, 1.0
    %v646 = vrcp.pop %v644
    %v647 = vmul.f32 1.0, %v646
    %v648 = vrcp.pop %v645
    %v649 = vmul.f32 1.0, %v648
    %vm650 = vcmask 648704
    %v651 = vsel %vm650, %v205, -inf
    %652 = vmax.xlane.f32.xlu0 %v651
    %v653 = vpop.xlane.xlu0 %652
    %v654 = vsub.f32 %v205, %v653
    %v655 = vmul.f32 %v654, 1.442695
    %v656 = vpow.pop %v655
    %658 = vrot.lane.b32.xlu0 %v656, 64
    %v659 = vpop.permute.xlu0 %658
    %vm661 = vcmask 123904
    %v662 = vsel %vm661, %v659, 0.0
    %663 = vadd.xlane.f32.xlu0 %v662
    %v664 = vpop.xlane.xlu0 %663
    %v665 = vrcp.pop %v664
    %v666 = vmul.f32 %v656, %v665
    %668 = vrot.lane.b32.xlu0 %v647, 80
    %v669 = vpop.permute.xlu0 %668
    %v671 = vmul.f32 %v209, %v669
    %v673 = vcombine.low %v647, %v649
    %v675 = vunpack.c.l.s4 1966171168
    %v676 = vunpack.c.0.s8 %v675
    %v677 = vlaneseq
    %v678 = vshrl.u32 %v677, 7
    %v679 = vsub.s32 %v676, %v678
    %v680 = vrot.slane %v673, %v679
    %v681 = vcombine.high %v680, %v680
    %v683 = vunpack.c.l.s4 1966171168
    %v684 = vunpack.c.0.s8 %v683
    %v685 = vlaneseq
    %v686 = vshrl.u32 %v685, 7
    %v687 = vsub.s32 %v684, %v686
    %v688 = vrot.slane %v680, %v687
    %v690 = vunpack.c.l.s4 1966171168
    %v691 = vunpack.c.0.s8 %v690
    %v692 = vlaneseq
    %v693 = vshrl.u32 %v692, 7
    %v694 = vsub.s32 %v691, %v693
    %v695 = vrot.slane %v681, %v694
    %v696 = vlaneseq
    %v697 = vshrl.u32 %v696, 7
    %v698 = vsub.s32 0, %v697
    %v699 = vrot.slane %v688, %v698
    %v700 = vlaneseq
    %v701 = vshrl.u32 %v700, 7
    %v702 = vsub.s32 1, %v701
    %v703 = vrot.slane %v688, %v702
    %v704 = vlaneseq
    %v705 = vshrl.u32 %v704, 7
    %v706 = vsub.s32 0, %v705
    %v707 = vrot.slane %v695, %v706
    %v708 = vlaneseq
    %v709 = vshrl.u32 %v708, 7
    %v710 = vsub.s32 1, %v709
    %v711 = vrot.slane %v695, %v710
    %712 = vrot.lane.b32.xlu0 %v699, 16
    %v713 = vpop.permute.xlu0 %712
    %714 = vrot.lane.b32.xlu0 %v703, 16
    %v715 = vpop.permute.xlu0 %714
    %716 = vrot.lane.b32.xlu0 %v707, 16
    %v717 = vpop.permute.xlu0 %716
    %718 = vrot.lane.b32.xlu0 %v711, 16
    %v719 = vpop.permute.xlu0 %718
    %v720 = vsel %vm421, %v713, %v715
    %v721 = vsel %vm421, %v717, %v719
    %v724 = vmul.f32 %v245, %v720
    %v725 = vmul.f32 %v246, %v720
    %v726 = vmul.f32 %v245, %v721
    %v727 = vmul.f32 %v246, %v721
    %v730 = vunpack.c.l.s4 1966171168
    %v731 = vunpack.c.0.s8 %v730
    %v732 = vlaneseq
    %v733 = vshrl.u32 %v732, 7
    %v734 = vsub.s32 %v731, %v733
    %v735 = vrot.slane %v671, %v734
    %v736 = vcombine.high %v735, %v735
    %v738 = vunpack.c.l.s4 1966171168
    %v739 = vunpack.c.0.s8 %v738
    %v740 = vlaneseq
    %v741 = vshrl.u32 %v740, 7
    %v742 = vsub.s32 %v739, %v741
    %v743 = vrot.slane %v735, %v742
    %v745 = vunpack.c.l.s4 1966171168
    %v746 = vunpack.c.0.s8 %v745
    %v747 = vlaneseq
    %v748 = vshrl.u32 %v747, 7
    %v749 = vsub.s32 %v746, %v748
    %v750 = vrot.slane %v736, %v749
    %v751 = vlaneseq
    %v752 = vshrl.u32 %v751, 7
    %v753 = vsub.s32 0, %v752
    %v754 = vrot.slane %v666, %v753
    %s756 = sor.u32 256, 64
    %757 = vbcast.lane.b32.xlu0 %v754, %s756
    %v758 = vpop.permute.xlu0 %757
    %s760 = sor.u32 256, 72
    %761 = vbcast.lane.b32.xlu0 %v754, %s760
    %v762 = vpop.permute.xlu0 %761
    %v763 = vlaneseq
    %v764 = vshrl.u32 %v763, 7
    %v765 = vsub.s32 1, %v764
    %v766 = vrot.slane %v666, %v765
    %s768 = sor.u32 256, 64
    %769 = vbcast.lane.b32.xlu0 %v766, %s768
    %v770 = vpop.permute.xlu0 %769
    %s772 = sor.u32 256, 72
    %773 = vbcast.lane.b32.xlu0 %v766, %s772
    %v774 = vpop.permute.xlu0 %773
    %v775 = vlaneseq
    %v776 = vshrl.u32 %v775, 7
    %v777 = vsub.s32 0, %v776
    %v778 = vrot.slane %v743, %v777
    %v779 = vlaneseq
    %v780 = vshrl.u32 %v779, 7
    %v781 = vsub.s32 0, %v780
    %v782 = vrot.slane %v750, %v781
    %v785 = vmul.f32 %v778, %v758
    %v786 = vmul.f32 %v778, %v762
    %v787 = vmul.f32 %v782, %v770
    %v788 = vmul.f32 %v782, %v774
    %793 = vrot.lane.b32.xlu0 %v785, 96
    %v794 = vpop.permute.xlu0 %793
    %795 = vrot.lane.b32.xlu0 %v786, 96
    %v796 = vpop.permute.xlu0 %795
    %797 = vrot.lane.b32.xlu0 %v787, 96
    %v798 = vpop.permute.xlu0 %797
    %799 = vrot.lane.b32.xlu0 %v788, 96
    %v800 = vpop.permute.xlu0 %799
    %v805 = vadd.f32 %v724, %v794
    %v806 = vadd.f32 %v725, %v796
    %v807 = vadd.f32 %v726, %v798
    %v808 = vadd.f32 %v727, %v800
    %809 = vst.msk [vmem:[#allocation12] sm:$0xff] %vm134, %v805
    %810 = vst.msk [vmem:[#allocation12 + $0x8] sm:$0xff] %vm134, %v806
    %811 = vst.msk [vmem:[#allocation12 + $0x10] sm:$0xff] %vm134, %v807
    %812 = vst.msk [vmem:[#allocation12 + $0x18] sm:$0xff] %vm134, %v808
    // Predicated region
    $region58: #{tpu_custom_call.1} parent=1 // pred_check
      _
    $region59: #{tpu_custom_call.1} parent=1 // pred_check_branch
      %814 = sbr.rel (0) target = $region61
    $region60: #{tpu_custom_call.1} parent=1 // pred_region
      %s816 = ssub.s32 32, 32
      %817 = vsyncadd [#allocation4], %s816
      %s819 = sshll.u32 [#allocation11], 4
      %s820 = int_to_ptr.vmem [resolvable:$true] %s819
      %822 = dma.vmem_to_hbm [thread:$0]  %s820, 32, %s9, [#allocation4]
    $region61: #{tpu_custom_call.1} parent=1 // pred_fallthru
      _
    // Predicated region
    $region62: #{tpu_custom_call.1} parent=1 // pred_check
      _
    $region63: #{tpu_custom_call.1} parent=1 // pred_check_branch
      %824 = sbr.rel (0) target = $region65
    $region64: #{tpu_custom_call.1} parent=1 // pred_region
      %s826 = ssub.s32 512, 512
      %827 = vsyncadd [#allocation13], %s826
      %s828 = sshll.u32 [#allocation12], 4
      %s829 = int_to_ptr.vmem [resolvable:$true] %s828
      %834 = dma.vmem_to_hbm [thread:$0]  %s829, 512, %s10, [#allocation13], 128, 128, 8
    $region65: #{tpu_custom_call.1} parent=1 // pred_fallthru
      _
    // Predicated region
    $region66: #{tpu_custom_call.1} parent=1 // pred_check
      _
    $region67: #{tpu_custom_call.1} parent=1 // pred_check_branch
      %836 = sbr.rel (0) target = $region69
    $region68: #{tpu_custom_call.1} parent=1 // pred_region
      %837 = dma.done [#allocation4], 32
    $region69: #{tpu_custom_call.1} parent=1 // pred_fallthru
      _
    // Predicated region
    $region70: #{tpu_custom_call.1} parent=1 // pred_check
      _
    $region71: #{tpu_custom_call.1} parent=1 // pred_check_branch
      %839 = sbr.rel (0) target = $region73
    $region72: #{tpu_custom_call.1} parent=1 // pred_region
      %840 = dma.done [#allocation13], 512
    $region73: #{tpu_custom_call.1} parent=1 // pred_fallthru
      _
    %841 = vsyncpa [#allocation3], 1
    %842 = vsyncpa [#allocation6], 1
    %843 = vsyncpa [#allocation9], 1
    %844 = vsyncpa [#allocation4], 1
    %845 = vsyncpa [#allocation13], 1

// kernel: tpu_custom_call.1
$region0: #{tpu_custom_call.1}
  #allocation0 [shape = 'u32[]', space=smem, size = 0x4, offset = 0x4, fixed_abs, tag = 'smem constant byte address 0x4 - core index']
  #allocation1 [shape = 'u32[144,128]{1,0:T(1,128)}', space=vmem, size = 0x12000, scoped, tag = 'internal scratch']
  %s0 = inlined_call_operand.hbm [shape: f32[2,32], index: 0, kind: input, shape index: {}]
  %s1 = inlined_call_operand.hbm [shape: f32[16,32], index: 1, kind: input, shape index: {}]
  %s2 = inlined_call_operand.hbm [shape: f32[32,144], index: 2, kind: input, shape index: {}]
  %s3 = inlined_call_operand.vmem [shape: f32[1,144], index: 3, kind: input, shape index: {}]
  %s4 = inlined_call_operand.hbm [shape: f32[32,64], index: 4, kind: input, shape index: {}]
  %s5 = inlined_call_operand.vmem [shape: f32[1,64], index: 5, kind: input, shape index: {}]
  %s6 = inlined_call_operand.hbm [shape: f32[32,96], index: 6, kind: input, shape index: {}]
  %s7 = inlined_call_operand.vmem [shape: f32[1,32], index: 7, kind: input, shape index: {}]
  %s8 = inlined_call_operand.vmem [shape: f32[8,32], index: 8, kind: input, shape index: {}]
  %s9 = inlined_call_operand.hbm [shape: f32[2,32], index: 9, kind: output, shape index: {0}]
  %s10 = inlined_call_operand.hbm [shape: f32[2,16,32], index: 10, kind: output, shape index: {1}]
  %11 = xla_tuple %s9, %s10
  %s12 = sld [smem:[#allocation0]]
  $region74: #{tpu_custom_call.1} parent=0
    _
  %s14 = ssub.s32 1, %s12
  %s15 = scalar_select 0, %s14, %s12
  $region1: #{tpu_custom_call.1} parent=0
    #allocation2 [shape = 'u8[1024]{0}', space=vmem, size = 0x400, scoped, tag = 'input window, operand 0, single buffered']
    #allocation3 [shape = 's32[1]{0}', space=sflag, size = 0x4, scoped, tag = 'scoped memory for tpu_custom_call.1']
    #allocation4 [shape = 's32[1]{0}', space=sflag, size = 0x4, scoped, tag = 'scoped memory for tpu_custom_call.1']
    #allocation5 [shape = 'u8[8192]{0}', space=vmem, size = 0x2000, scoped, tag = 'input window, operand 1, single buffered']
    #allocation6 [shape = 's32[1]{0}', space=sflag, size = 0x4, scoped, tag = 'scoped memory for tpu_custom_call.1']
    #allocation7 [shape = 'u8[32768]{0}', space=vmem, size = 0x8000, scoped, tag = 'input window, operand 2, single buffered']
    #allocation8 [shape = 'u8[16384]{0}', space=vmem, size = 0x4000, scoped, tag = 'input window, operand 4, single buffered']
    #allocation9 [shape = 's32[1]{0}', space=sflag, size = 0x4, scoped, tag = 'scoped memory for tpu_custom_call.1']
    #allocation10 [shape = 'u8[16384]{0}', space=vmem, size = 0x4000, scoped, tag = 'input window, operand 6, single buffered']
    #allocation11 [shape = 'u8[1024]{0}', space=vmem, size = 0x400, scoped, tag = 'output window, operand 0, single buffered']
    #allocation12 [shape = 'u8[16384]{0}', space=vmem, size = 0x4000, scoped, tag = 'output window, operand 1, single buffered']
    #allocation13 [shape = 's32[1]{0}', space=sflag, size = 0x4, scoped, tag = 'scoped memory for tpu_custom_call.1']
    %16 = vsyncpa [#allocation3], 0
    %17 = vsyncpa [#allocation6], 0
    %18 = vsyncpa [#allocation9], 0
    %19 = vsyncpa [#allocation4], 0
    %20 = vsyncpa [#allocation13], 0
    // Predicated region
    $region2: #{tpu_custom_call.1} parent=1 // pred_check
      _
    $region3: #{tpu_custom_call.1} parent=1 // pred_check_branch
      %22 = sbr.rel (0) target = $region5
    $region4: #{tpu_custom_call.1} parent=1 // pred_region
      %s24 = ssub.s32 32, 32
      %25 = vsyncadd [#allocation3], %s24
      %s27 = sshll.u32 [#allocation2], 4
      %s28 = int_to_ptr.vmem [resolvable:$true] %s27
      %30 = dma.hbm_to_vmem [thread:$0]  %s0, 32, %s28, [#allocation3]
    $region5: #{tpu_custom_call.1} parent=1 // pred_fallthru
      _
    // Predicated region
    $region6: #{tpu_custom_call.1} parent=1 // pred_check
      _
    $region7: #{tpu_custom_call.1} parent=1 // pred_check_branch
      %32 = sbr.rel (0) target = $region9
    $region8: #{tpu_custom_call.1} parent=1 // pred_region
      %s34 = ssub.s32 256, 256
      %35 = vsyncadd [#allocation6], %s34
      %s36 = sshll.u32 [#allocation5], 4
      %s37 = int_to_ptr.vmem [resolvable:$true] %s36
      %42 = dma.hbm_to_vmem [thread:$0]  %s1, 256, %s37, [#allocation6], 128, 128, 8
    $region9: #{tpu_custom_call.1} parent=1 // pred_fallthru
      _
    // Predicated region
    $region10: #{tpu_custom_call.1} parent=1 // pred_check
      _
    $region11: #{tpu_custom_call.1} parent=1 // pred_check_branch
      %44 = sbr.rel (0) target = $region13
    $region12: #{tpu_custom_call.1} parent=1 // pred_region
      %s46 = ssub.s32 1024, 1024
      %47 = vsyncadd [#allocation6], %s46
      %s48 = sshll.u32 [#allocation7], 4
      %s49 = int_to_ptr.vmem [resolvable:$true] %s48
      %54 = dma.hbm_to_vmem [thread:$0]  %s2, 1024, %s49, [#allocation6], 256, 256, 16
    $region13: #{tpu_custom_call.1} parent=1 // pred_fallthru
      _
    // Predicated region
    $region14: #{tpu_custom_call.1} parent=1 // pred_check
      _
    $region15: #{tpu_custom_call.1} parent=1 // pred_check_branch
      %56 = sbr.rel (0) target = $region17
    $region16: #{tpu_custom_call.1} parent=1 // pred_region
      _
    $region17: #{tpu_custom_call.1} parent=1 // pred_fallthru
      _
    // Predicated region
    $region18: #{tpu_custom_call.1} parent=1 // pred_check
      _
    $region19: #{tpu_custom_call.1} parent=1 // pred_check_branch
      %58 = sbr.rel (0) target = $region21
    $region20: #{tpu_custom_call.1} parent=1 // pred_region
      %s60 = ssub.s32 512, 512
      %61 = vsyncadd [#allocation9], %s60
      %s62 = sshll.u32 [#allocation8], 4
      %s63 = int_to_ptr.vmem [resolvable:$true] %s62
      %68 = dma.hbm_to_vmem [thread:$0]  %s4, 512, %s63, [#allocation9], 128, 128, 8
    $region21: #{tpu_custom_call.1} parent=1 // pred_fallthru
      _
    // Predicated region
    $region22: #{tpu_custom_call.1} parent=1 // pred_check
      _
    $region23: #{tpu_custom_call.1} parent=1 // pred_check_branch
      %70 = sbr.rel (0) target = $region25
    $region24: #{tpu_custom_call.1} parent=1 // pred_region
      _
    $region25: #{tpu_custom_call.1} parent=1 // pred_fallthru
      _
    // Predicated region
    $region26: #{tpu_custom_call.1} parent=1 // pred_check
      _
    $region27: #{tpu_custom_call.1} parent=1 // pred_check_branch
      %72 = sbr.rel (0) target = $region29
    $region28: #{tpu_custom_call.1} parent=1 // pred_region
      %s74 = ssub.s32 512, 512
      %75 = vsyncadd [#allocation9], %s74
      %s76 = sshll.u32 [#allocation10], 4
      %s77 = int_to_ptr.vmem [resolvable:$true] %s76
      %82 = dma.hbm_to_vmem [thread:$0]  %s6, 512, %s77, [#allocation9], 128, 128, 8
    $region29: #{tpu_custom_call.1} parent=1 // pred_fallthru
      _
    // Predicated region
    $region30: #{tpu_custom_call.1} parent=1 // pred_check
      _
    $region31: #{tpu_custom_call.1} parent=1 // pred_check_branch
      %84 = sbr.rel (0) target = $region33
    $region32: #{tpu_custom_call.1} parent=1 // pred_region
      _
    $region33: #{tpu_custom_call.1} parent=1 // pred_fallthru
      _
    // Predicated region
    $region34: #{tpu_custom_call.1} parent=1 // pred_check
      _
    $region35: #{tpu_custom_call.1} parent=1 // pred_check_branch
      %86 = sbr.rel (0) target = $region37
    $region36: #{tpu_custom_call.1} parent=1 // pred_region
      _
    $region37: #{tpu_custom_call.1} parent=1 // pred_fallthru
      _
    // Predicated region
    $region38: #{tpu_custom_call.1} parent=1 // pred_check
      _
    $region39: #{tpu_custom_call.1} parent=1 // pred_check_branch
      %88 = sbr.rel (0) target = $region41
    $region40: #{tpu_custom_call.1} parent=1 // pred_region
      %89 = dma.done [#allocation3], 32
    $region41: #{tpu_custom_call.1} parent=1 // pred_fallthru
      _
    // Predicated region
    $region42: #{tpu_custom_call.1} parent=1 // pred_check
      _
    $region43: #{tpu_custom_call.1} parent=1 // pred_check_branch
      %91 = sbr.rel (0) target = $region45
    $region44: #{tpu_custom_call.1} parent=1 // pred_region
      %92 = dma.done [#allocation6], 256
    $region45: #{tpu_custom_call.1} parent=1 // pred_fallthru
      _
    // Predicated region
    $region46: #{tpu_custom_call.1} parent=1 // pred_check
      _
    $region47: #{tpu_custom_call.1} parent=1 // pred_check_branch
      %94 = sbr.rel (0) target = $region49
    $region48: #{tpu_custom_call.1} parent=1 // pred_region
      %95 = dma.done [#allocation6], 1024
    $region49: #{tpu_custom_call.1} parent=1 // pred_fallthru
      _
    // Predicated region
    $region50: #{tpu_custom_call.1} parent=1 // pred_check
      _
    $region51: #{tpu_custom_call.1} parent=1 // pred_check_branch
      %97 = sbr.rel (0) target = $region53
    $region52: #{tpu_custom_call.1} parent=1 // pred_region
      %98 = dma.done [#allocation9], 512
    $region53: #{tpu_custom_call.1} parent=1 // pred_fallthru
      _
    // Predicated region
    $region54: #{tpu_custom_call.1} parent=1 // pred_check
      _
    $region55: #{tpu_custom_call.1} parent=1 // pred_check_branch
      %100 = sbr.rel (0) target = $region57
    $region56: #{tpu_custom_call.1} parent=1 // pred_region
      %101 = dma.done [#allocation9], 512
    $region57: #{tpu_custom_call.1} parent=1 // pred_fallthru
      _
    %v102 = vld [vmem:[#allocation2] sm:$0x3]
    %v103 = vld [vmem:[#allocation7] sm:$0xff]
    %v104 = vld [vmem:[#allocation7 + $0x8] sm:$0xff]
    %v105 = vld [vmem:[#allocation7 + $0x10] sm:$0xff]
    %v106 = vld [vmem:[#allocation7 + $0x18] sm:$0xff]
    %v107 = vld [vmem:[#allocation7 + $0x20] sm:$0xff]
    %v108 = vld [vmem:[#allocation7 + $0x28] sm:$0xff]
    %v109 = vld [vmem:[#allocation7 + $0x30] sm:$0xff]
    %v110 = vld [vmem:[#allocation7 + $0x38] sm:$0xff]
    %v111 = vld [vmem:[%s3] sm:$0x3]
    %v112 = vld [vmem:[#allocation8] sm:$0xff]
    %v113 = vld [vmem:[#allocation8 + $0x8] sm:$0xff]
    %v114 = vld [vmem:[#allocation8 + $0x10] sm:$0xff]
    %v115 = vld [vmem:[#allocation8 + $0x18] sm:$0xff]
    %v116 = vld [vmem:[%s5] sm:$0x1]
    %v117 = vld [vmem:[#allocation10] sm:$0xff]
    %v118 = vld [vmem:[#allocation10 + $0x8] sm:$0xff]
    %v119 = vld [vmem:[#allocation10 + $0x10] sm:$0xff]
    %v120 = vld [vmem:[#allocation10 + $0x18] sm:$0xff]
    %v121 = vld [vmem:[%s7] sm:$0x1]
    %v122 = vld [vmem:[%s8] sm:$0xff]
    %v124 = vlaneseq
    %v125 = vshrl.u32 %v124, 7
    %v126 = vsub.s32 0, %v125
    %v127 = vrot.slane %v111, %v126
    %v128 = vlaneseq
    %v129 = vshrl.u32 %v128, 7
    %v130 = vsub.s32 1, %v129
    %v131 = vrot.slane %v111, %v130
    %vm134 = vcmask 261120
    %v136 = vsel %vm134, %v102, 0
    %138 = vmatprep.subr.mxu0 %v104
    %139 = vmatpush1.msra.mxu0 %v103
    %140 = vmatprep.subr.mxu0 %v106
    %141 = vmatpush1.msra.mxu0 %v105
    %142 = vmatprep.subr.mxu0 %v108
    %143 = vmatpush1.msra.mxu0 %v107
    %144 = vmatprep.subr.mxu0 %v110
    %145 = vmatpush1.msra.mxu0 %v109
    %146 = vmatprep.subr.mxu0 0.0
    %147 = vmatpush1.msra.mxu0 0.0
    %148 = vmatprep.subr.mxu0 0.0
    %149 = vmatpush1.msra.mxu0 0.0
    %150 = vmatprep.subr.mxu0 0.0
    %151 = vmatpush1.msra.mxu0 0.0
    %152 = vmatprep.subr.mxu0 0.0
    %153 = vmatpush1.msra.mxu0 0.0
    %154 = vmatprep.subr.mxu0 0.0
    %155 = vmatpush1.msra.mxu0 0.0
    %156 = vmatprep.subr.mxu0 0.0
    %157 = vmatpush1.msra.mxu0 0.0
    %158 = vmatprep.subr.mxu0 0.0
    %159 = vmatpush1.msra.mxu0 0.0
    %160 = vmatprep.subr.mxu0 0.0
    %161 = vmatpush1.msra.mxu0 0.0
    %162 = vmatprep.subr.mxu0 0.0
    %163 = vmatpush1.msra.mxu0 0.0
    %164 = vmatprep.subr.mxu0 0.0
    %165 = vmatpush1.msra.mxu0 0.0
    %166 = vmatprep.subr.mxu0 0.0
    %167 = vmatpush1.msra.mxu0 0.0
    %168 = vmatprep.subr.mxu0 0.0
    %169 = vmatpush1.msra.mxu0 0.0
    %170 = vmatprep.subr.mxu0 0.0
    %171 = vmatpush1.msra.mxu0 0.0
    %172 = vmatprep.subr.mxu0 0.0
    %173 = vmatpush1.msra.mxu0 0.0
    %174 = vmatprep.subr.mxu0 0.0
    %175 = vmatpush1.msra.mxu0 0.0
    %176 = vmatprep.subr.mxu0 0.0
    %177 = vmatpush1.msra.mxu0 0.0
    %178 = vmatprep.subr.mxu0 0.0
    %179 = vmatpush1.msra.mxu0 0.0
    %180 = vmatprep.subr.mxu0 0.0
    %181 = vmatpush1.msra.mxu0 0.0
    %182 = vmatprep.subr.mxu0 0.0
    %183 = vmatpush1.msra.mxu0 0.0
    %184 = vmatprep.subr.mxu0 0.0
    %185 = vmatpush1.msra.mxu0 0.0
    %186 = vmatprep.subr.mxu0 0.0
    %187 = vmatpush1.msra.mxu0 0.0
    %188 = vmatprep.subr.mxu0 0.0
    %189 = vmatpush1.msra.mxu0 0.0
    %190 = vmatprep.subr.mxu0 0.0
    %191 = vmatpush1.msra.mxu0 0.0
    %192 = vmatprep.subr.mxu0 0.0
    %193 = vmatpush1.msra.mxu0 0.0
    %194 = vmatprep.subr.mxu0 0.0
    %195 = vmatpush1.msra.mxu0 0.0
    %196 = vmatprep.subr.mxu0 0.0
    %197 = vmatpush1.msra.mxu0 0.0
    %198 = vmatprep.subr.mxu0 0.0
    %199 = vmatpush1.msra.mxu0 0.0
    %200 = vmatprep.subr.mxu0 0.0
    %201 = vmatpush1.msra.mxu0 0.0
    %202 = vmatprep.mubr.f32.mxu0 0.0
    %203 = vmatmul.mubr.f32.gmra.mrb[0].mxu0 %v136
    %v204 = vpop.f32.mrb[0].mxu0
    %v205 = vadd.f32 %v127, %v204
    %v206 = vpop.f32.mrb[0].mxu0
    %v207 = vadd.f32 %v131, %v206
    %208 = vdwg.mxu0
    %v209 = vtanh.pop %v205
    %v212 = vunpack.c.l.s4 1966171168
    %v213 = vunpack.c.0.s8 %v212
    %v214 = vlaneseq
    %v215 = vshrl.u32 %v214, 7
    %v216 = vsub.s32 %v213, %v215
    %v217 = vrot.slane %v205, %v216
    %v218 = vcombine.high %v217, %v217
    %v220 = vunpack.c.l.s4 1966171168
    %v221 = vunpack.c.0.s8 %v220
    %v222 = vlaneseq
    %v223 = vshrl.u32 %v222, 7
    %v224 = vsub.s32 %v221, %v223
    %v225 = vrot.slane %v217, %v224
    %v227 = vunpack.c.l.s4 1966171168
    %v228 = vunpack.c.0.s8 %v227
    %v229 = vlaneseq
    %v230 = vshrl.u32 %v229, 7
    %v231 = vsub.s32 %v228, %v230
    %v232 = vrot.slane %v218, %v231
    %v233 = vlaneseq
    %v234 = vshrl.u32 %v233, 7
    %v235 = vsub.s32 0, %v234
    %v236 = vrot.slane %v225, %v235
    %v237 = vlaneseq
    %v238 = vshrl.u32 %v237, 7
    %v239 = vsub.s32 0, %v238
    %v240 = vrot.slane %v232, %v239
    %v243 = vmul.f32 %v236, %v122
    %v244 = vmul.f32 %v240, %v122
    %v245 = vld [vmem:[#allocation5] sm:$0xff]
    %v246 = vld [vmem:[#allocation5 + $0x8] sm:$0xff]
    %v248 = vlaneseq
    %v249 = vshrl.u32 %v248, 7
    %v250 = vsub.s32 0, %v249
    %v251 = vrot.slane %v116, %v250
    %v254 = vsel %vm134, %v245, 0
    %v257 = vsel %vm134, %v246, 0
    %259 = vmatprep.subr.mxu0 0.0
    %260 = vmatpush1.msra.mxu0 %v112
    %261 = vmatprep.subr.mxu0 0.0
    %262 = vmatpush1.msra.mxu0 %v113
    %263 = vmatprep.subr.mxu0 0.0
    %264 = vmatpush1.msra.mxu0 %v114
    %265 = vmatprep.subr.mxu0 0.0
    %266 = vmatpush1.msra.mxu0 %v115
    %267 = vmatprep.subr.mxu0 0.0
    %268 = vmatpush1.msra.mxu0 0.0
    %269 = vmatprep.subr.mxu0 0.0
    %270 = vmatpush1.msra.mxu0 0.0
    %271 = vmatprep.subr.mxu0 0.0
    %272 = vmatpush1.msra.mxu0 0.0
    %273 = vmatprep.subr.mxu0 0.0
    %274 = vmatpush1.msra.mxu0 0.0
    %275 = vmatprep.subr.mxu0 0.0
    %276 = vmatpush1.msra.mxu0 0.0
    %277 = vmatprep.subr.mxu0 0.0
    %278 = vmatpush1.msra.mxu0 0.0
    %279 = vmatprep.subr.mxu0 0.0
    %280 = vmatpush1.msra.mxu0 0.0
    %281 = vmatprep.subr.mxu0 0.0
    %282 = vmatpush1.msra.mxu0 0.0
    %283 = vmatprep.subr.mxu0 0.0
    %284 = vmatpush1.msra.mxu0 0.0
    %285 = vmatprep.subr.mxu0 0.0
    %286 = vmatpush1.msra.mxu0 0.0
    %287 = vmatprep.subr.mxu0 0.0
    %288 = vmatpush1.msra.mxu0 0.0
    %289 = vmatprep.subr.mxu0 0.0
    %290 = vmatpush1.msra.mxu0 0.0
    %291 = vmatprep.subr.mxu0 0.0
    %292 = vmatpush1.msra.mxu0 0.0
    %293 = vmatprep.subr.mxu0 0.0
    %294 = vmatpush1.msra.mxu0 0.0
    %295 = vmatprep.subr.mxu0 0.0
    %296 = vmatpush1.msra.mxu0 0.0
    %297 = vmatprep.subr.mxu0 0.0
    %298 = vmatpush1.msra.mxu0 0.0
    %299 = vmatprep.subr.mxu0 0.0
    %300 = vmatpush1.msra.mxu0 0.0
    %301 = vmatprep.subr.mxu0 0.0
    %302 = vmatpush1.msra.mxu0 0.0
    %303 = vmatprep.subr.mxu0 0.0
    %304 = vmatpush1.msra.mxu0 0.0
    %305 = vmatprep.subr.mxu0 0.0
    %306 = vmatpush1.msra.mxu0 0.0
    %307 = vmatprep.subr.mxu0 0.0
    %308 = vmatpush1.msra.mxu0 0.0
    %309 = vmatprep.subr.mxu0 0.0
    %310 = vmatpush1.msra.mxu0 0.0
    %311 = vmatprep.subr.mxu0 0.0
    %312 = vmatpush1.msra.mxu0 0.0
    %313 = vmatprep.subr.mxu0 0.0
    %314 = vmatpush1.msra.mxu0 0.0
    %315 = vmatprep.subr.mxu0 0.0
    %316 = vmatpush1.msra.mxu0 0.0
    %317 = vmatprep.subr.mxu0 0.0
    %318 = vmatpush1.msra.mxu0 0.0
    %319 = vmatprep.subr.mxu0 0.0
    %320 = vmatpush1.msra.mxu0 0.0
    %321 = vmatprep.subr.mxu0 0.0
    %322 = vmatpush1.msra.mxu0 0.0
    %323 = vmatprep.mubr.f32.mxu0 0.0
    %324 = vmatmul.mubr.f32.gmra.mrb[0].mxu0 %v254
    %v325 = vpop.f32.mrb[0].mxu0
    %v326 = vadd.f32 %v251, %v325
    %v327 = vpop.f32.mrb[0].mxu0
    %328 = vmatprep.mubr.f32.mxu0 0.0
    %329 = vmatmul.mubr.f32.gmra.mrb[0].mxu0 %v257
    %v330 = vpop.f32.mrb[0].mxu0
    %v331 = vadd.f32 %v251, %v330
    %v332 = vpop.f32.mrb[0].mxu0
    %333 = vdwg.mxu0
    %v335 = vsel %vm134, %v243, 0
    %v338 = vsel %vm134, %v244, 0
    %v341 = vsel %vm134, %v326, 0
    %v344 = vsel %vm134, %v331, 0
    %346 = vmatprep.subr.mxu0 0.0
    %347 = vmatpush1.xpose.msra.mxu0 %v341
    %348 = vmatprep.subr.mxu0 0.0
    %349 = vmatpush1.xpose.msra.mxu0 %v344
    %350 = vmatprep.subr.mxu0 0.0
    %351 = vmatpush1.xpose.msra.mxu0 0.0
    %352 = vmatprep.subr.mxu0 0.0
    %353 = vmatpush1.xpose.msra.mxu0 0.0
    %354 = vmatprep.subr.mxu0 0.0
    %355 = vmatpush1.xpose.msra.mxu0 0.0
    %356 = vmatprep.subr.mxu0 0.0
    %357 = vmatpush1.xpose.msra.mxu0 0.0
    %358 = vmatprep.subr.mxu0 0.0
    %359 = vmatpush1.xpose.msra.mxu0 0.0
    %360 = vmatprep.subr.mxu0 0.0
    %361 = vmatpush1.xpose.msra.mxu0 0.0
    %362 = vmatprep.subr.mxu0 0.0
    %363 = vmatpush1.xpose.msra.mxu0 0.0
    %364 = vmatprep.subr.mxu0 0.0
    %365 = vmatpush1.xpose.msra.mxu0 0.0
    %366 = vmatprep.subr.mxu0 0.0
    %367 = vmatpush1.xpose.msra.mxu0 0.0
    %368 = vmatprep.subr.mxu0 0.0
    %369 = vmatpush1.xpose.msra.mxu0 0.0
    %370 = vmatprep.subr.mxu0 0.0
    %371 = vmatpush1.xpose.msra.mxu0 0.0
    %372 = vmatprep.subr.mxu0 0.0
    %373 = vmatpush1.xpose.msra.mxu0 0.0
    %374 = vmatprep.subr.mxu0 0.0
    %375 = vmatpush1.xpose.msra.mxu0 0.0
    %376 = vmatprep.subr.mxu0 0.0
    %377 = vmatpush1.xpose.msra.mxu0 0.0
    %378 = vmatprep.subr.mxu0 0.0
    %379 = vmatpush1.xpose.msra.mxu0 0.0
    %380 = vmatprep.subr.mxu0 0.0
    %381 = vmatpush1.xpose.msra.mxu0 0.0
    %382 = vmatprep.subr.mxu0 0.0
    %383 = vmatpush1.xpose.msra.mxu0 0.0
    %384 = vmatprep.subr.mxu0 0.0
    %385 = vmatpush1.xpose.msra.mxu0 0.0
    %386 = vmatprep.subr.mxu0 0.0
    %387 = vmatpush1.xpose.msra.mxu0 0.0
    %388 = vmatprep.subr.mxu0 0.0
    %389 = vmatpush1.xpose.msra.mxu0 0.0
    %390 = vmatprep.subr.mxu0 0.0
    %391 = vmatpush1.xpose.msra.mxu0 0.0
    %392 = vmatprep.subr.mxu0 0.0
    %393 = vmatpush1.xpose.msra.mxu0 0.0
    %394 = vmatprep.subr.mxu0 0.0
    %395 = vmatpush1.xpose.msra.mxu0 0.0
    %396 = vmatprep.subr.mxu0 0.0
    %397 = vmatpush1.xpose.msra.mxu0 0.0
    %398 = vmatprep.subr.mxu0 0.0
    %399 = vmatpush1.xpose.msra.mxu0 0.0
    %400 = vmatprep.subr.mxu0 0.0
    %401 = vmatpush1.xpose.msra.mxu0 0.0
    %402 = vmatprep.subr.mxu0 0.0
    %403 = vmatpush1.xpose.msra.mxu0 0.0
    %404 = vmatprep.subr.mxu0 0.0
    %405 = vmatpush1.xpose.msra.mxu0 0.0
    %406 = vmatprep.subr.mxu0 0.0
    %407 = vmatpush1.xpose.msra.mxu0 0.0
    %408 = vmatprep.subr.mxu0 0.0
    %409 = vmatpush1.xpose.msra.mxu0 0.0
    %410 = vmatprep.mubr.f32.mxu0 0.0
    %411 = vmatmul.mubr.f32.gmra.mrb[0].mxu0 %v335
    %v412 = vpop.f32.mrb[0].mxu0
    %v413 = vadd.f32 0.0, %v412
    %v414 = vpop.f32.mrb[0].mxu0
    %415 = vmatprep.mubr.f32.mxu0 0.0
    %416 = vmatmul.mubr.f32.gmra.mrb[0].mxu0 %v338
    %v417 = vpop.f32.mrb[0].mxu0
    %v418 = vadd.f32 0.0, %v417
    %v419 = vpop.f32.mrb[0].mxu0
    %420 = vdwg.mxu0
    %vm421 = vcmask 130048
    %v422 = vsel %vm421, %v413, -inf
    %423 = vmax.xlane.f32.xlu0 %v422
    %v424 = vpop.xlane.xlu0 %423
    %v425 = vsel %vm421, %v418, -inf
    %426 = vmax.xlane.f32.xlu0 %v425
    %v427 = vpop.xlane.xlu0 %426
    %v428 = vsub.f32 %v413, %v424
    %v429 = vsub.f32 %v418, %v427
    %v430 = vmul.f32 %v428, 1.442695
    %v431 = vpow.pop %v430
    %v432 = vmul.f32 %v429, 1.442695
    %v433 = vpow.pop %v432
    %v434 = vsel %vm421, %v431, 0.0
    %435 = vadd.xlane.f32.xlu0 %v434
    %v436 = vpop.xlane.xlu0 %435
    %v437 = vsel %vm421, %v433, 0.0
    %438 = vadd.xlane.f32.xlu0 %v437
    %v439 = vpop.xlane.xlu0 %438
    %v440 = vrcp.pop %v436
    %v441 = vrcp.pop %v439
    %v442 = vmul.f32 %v431, %v440
    %v443 = vmul.f32 %v433, %v441
    %444 = vrot.lane.b32.xlu0 %v326, 96
    %v445 = vpop.permute.xlu0 %444
    %446 = vrot.lane.b32.xlu0 %v331, 96
    %v447 = vpop.permute.xlu0 %446
    %v451 = vsel %vm421, %v442, 0
    %v454 = vsel %vm421, %v443, 0
    %456 = vmatprep.subr.mxu0 0.0
    %457 = vmatpush1.msra.mxu0 %v445
    %458 = vmatprep.subr.mxu0 0.0
    %459 = vmatpush1.msra.mxu0 %v447
    %460 = vmatprep.subr.mxu0 0.0
    %461 = vmatpush1.msra.mxu0 0.0
    %462 = vmatprep.subr.mxu0 0.0
    %463 = vmatpush1.msra.mxu0 0.0
    %464 = vmatprep.subr.mxu0 0.0
    %465 = vmatpush1.msra.mxu0 0.0
    %466 = vmatprep.subr.mxu0 0.0
    %467 = vmatpush1.msra.mxu0 0.0
    %468 = vmatprep.subr.mxu0 0.0
    %469 = vmatpush1.msra.mxu0 0.0
    %470 = vmatprep.subr.mxu0 0.0
    %471 = vmatpush1.msra.mxu0 0.0
    %472 = vmatprep.subr.mxu0 0.0
    %473 = vmatpush1.msra.mxu0 0.0
    %474 = vmatprep.subr.mxu0 0.0
    %475 = vmatpush1.msra.mxu0 0.0
    %476 = vmatprep.subr.mxu0 0.0
    %477 = vmatpush1.msra.mxu0 0.0
    %478 = vmatprep.subr.mxu0 0.0
    %479 = vmatpush1.msra.mxu0 0.0
    %480 = vmatprep.subr.mxu0 0.0
    %481 = vmatpush1.msra.mxu0 0.0
    %482 = vmatprep.subr.mxu0 0.0
    %483 = vmatpush1.msra.mxu0 0.0
    %484 = vmatprep.subr.mxu0 0.0
    %485 = vmatpush1.msra.mxu0 0.0
    %486 = vmatprep.subr.mxu0 0.0
    %487 = vmatpush1.msra.mxu0 0.0
    %488 = vmatprep.subr.mxu0 0.0
    %489 = vmatpush1.msra.mxu0 0.0
    %490 = vmatprep.subr.mxu0 0.0
    %491 = vmatpush1.msra.mxu0 0.0
    %492 = vmatprep.subr.mxu0 0.0
    %493 = vmatpush1.msra.mxu0 0.0
    %494 = vmatprep.subr.mxu0 0.0
    %495 = vmatpush1.msra.mxu0 0.0
    %496 = vmatprep.subr.mxu0 0.0
    %497 = vmatpush1.msra.mxu0 0.0
    %498 = vmatprep.subr.mxu0 0.0
    %499 = vmatpush1.msra.mxu0 0.0
    %500 = vmatprep.subr.mxu0 0.0
    %501 = vmatpush1.msra.mxu0 0.0
    %502 = vmatprep.subr.mxu0 0.0
    %503 = vmatpush1.msra.mxu0 0.0
    %504 = vmatprep.subr.mxu0 0.0
    %505 = vmatpush1.msra.mxu0 0.0
    %506 = vmatprep.subr.mxu0 0.0
    %507 = vmatpush1.msra.mxu0 0.0
    %508 = vmatprep.subr.mxu0 0.0
    %509 = vmatpush1.msra.mxu0 0.0
    %510 = vmatprep.subr.mxu0 0.0
    %511 = vmatpush1.msra.mxu0 0.0
    %512 = vmatprep.subr.mxu0 0.0
    %513 = vmatpush1.msra.mxu0 0.0
    %514 = vmatprep.subr.mxu0 0.0
    %515 = vmatpush1.msra.mxu0 0.0
    %516 = vmatprep.subr.mxu0 0.0
    %517 = vmatpush1.msra.mxu0 0.0
    %518 = vmatprep.subr.mxu0 0.0
    %519 = vmatpush1.msra.mxu0 0.0
    %520 = vmatprep.mubr.f32.mxu0 0.0
    %521 = vmatmul.mubr.f32.gmra.mrb[0].mxu0 %v451
    %v522 = vpop.f32.mrb[0].mxu0
    %v523 = vadd.f32 0.0, %v522
    %v524 = vpop.f32.mrb[0].mxu0
    %525 = vmatprep.mubr.f32.mxu0 0.0
    %526 = vmatmul.mubr.f32.gmra.mrb[0].mxu0 %v454
    %v527 = vpop.f32.mrb[0].mxu0
    %v528 = vadd.f32 0.0, %v527
    %v529 = vpop.f32.mrb[0].mxu0
    %530 = vdwg.mxu0
    %v531 = vmul.f32 %v523, %v122
    %v532 = vmul.f32 %v528, %v122
    %v533 = vsel %vm134, %v531, 0.0
    %v534 = vrot.slane %v533, 4
    %v535 = vadd.f32 %v533, %v534
    %v536 = vrot.slane %v535, 2
    %v537 = vadd.f32 %v535, %v536
    %v538 = vrot.slane %v537, 1
    %v539 = vadd.f32 %v537, %v538
    %v540 = vsel %vm134, %v532, 0.0
    %v541 = vrot.slane %v540, 4
    %v542 = vadd.f32 %v540, %v541
    %v543 = vrot.slane %v542, 2
    %v544 = vadd.f32 %v542, %v543
    %v545 = vrot.slane %v544, 1
    %v546 = vadd.f32 %v544, %v545
    %vm549 = vcmask 1041409
    %v550 = vsel %vm549, %v546, %v539
    %v551 = vsel %vm134, %v550, 0
    %553 = vmatprep.subr.mxu0 0.0
    %554 = vmatpush1.msra.mxu0 %v117
    %555 = vmatprep.subr.mxu0 0.0
    %556 = vmatpush1.msra.mxu0 %v118
    %557 = vmatprep.subr.mxu0 0.0
    %558 = vmatpush1.msra.mxu0 %v119
    %559 = vmatprep.subr.mxu0 0.0
    %560 = vmatpush1.msra.mxu0 %v120
    %561 = vmatprep.subr.mxu0 0.0
    %562 = vmatpush1.msra.mxu0 0.0
    %563 = vmatprep.subr.mxu0 0.0
    %564 = vmatpush1.msra.mxu0 0.0
    %565 = vmatprep.subr.mxu0 0.0
    %566 = vmatpush1.msra.mxu0 0.0
    %567 = vmatprep.subr.mxu0 0.0
    %568 = vmatpush1.msra.mxu0 0.0
    %569 = vmatprep.subr.mxu0 0.0
    %570 = vmatpush1.msra.mxu0 0.0
    %571 = vmatprep.subr.mxu0 0.0
    %572 = vmatpush1.msra.mxu0 0.0
    %573 = vmatprep.subr.mxu0 0.0
    %574 = vmatpush1.msra.mxu0 0.0
    %575 = vmatprep.subr.mxu0 0.0
    %576 = vmatpush1.msra.mxu0 0.0
    %577 = vmatprep.subr.mxu0 0.0
    %578 = vmatpush1.msra.mxu0 0.0
    %579 = vmatprep.subr.mxu0 0.0
    %580 = vmatpush1.msra.mxu0 0.0
    %581 = vmatprep.subr.mxu0 0.0
    %582 = vmatpush1.msra.mxu0 0.0
    %583 = vmatprep.subr.mxu0 0.0
    %584 = vmatpush1.msra.mxu0 0.0
    %585 = vmatprep.subr.mxu0 0.0
    %586 = vmatpush1.msra.mxu0 0.0
    %587 = vmatprep.subr.mxu0 0.0
    %588 = vmatpush1.msra.mxu0 0.0
    %589 = vmatprep.subr.mxu0 0.0
    %590 = vmatpush1.msra.mxu0 0.0
    %591 = vmatprep.subr.mxu0 0.0
    %592 = vmatpush1.msra.mxu0 0.0
    %593 = vmatprep.subr.mxu0 0.0
    %594 = vmatpush1.msra.mxu0 0.0
    %595 = vmatprep.subr.mxu0 0.0
    %596 = vmatpush1.msra.mxu0 0.0
    %597 = vmatprep.subr.mxu0 0.0
    %598 = vmatpush1.msra.mxu0 0.0
    %599 = vmatprep.subr.mxu0 0.0
    %600 = vmatpush1.msra.mxu0 0.0
    %601 = vmatprep.subr.mxu0 0.0
    %602 = vmatpush1.msra.mxu0 0.0
    %603 = vmatprep.subr.mxu0 0.0
    %604 = vmatpush1.msra.mxu0 0.0
    %605 = vmatprep.subr.mxu0 0.0
    %606 = vmatpush1.msra.mxu0 0.0
    %607 = vmatprep.subr.mxu0 0.0
    %608 = vmatpush1.msra.mxu0 0.0
    %609 = vmatprep.subr.mxu0 0.0
    %610 = vmatpush1.msra.mxu0 0.0
    %611 = vmatprep.subr.mxu0 0.0
    %612 = vmatpush1.msra.mxu0 0.0
    %613 = vmatprep.subr.mxu0 0.0
    %614 = vmatpush1.msra.mxu0 0.0
    %615 = vmatprep.subr.mxu0 0.0
    %616 = vmatpush1.msra.mxu0 0.0
    %617 = vmatprep.mubr.f32.mxu0 0.0
    %618 = vmatmul.mubr.f32.gmra.mrb[0].mxu0 %v551
    %v619 = vpop.f32.mrb[0].mxu0
    %v620 = vadd.f32 0.0, %v619
    %v621 = vpop.f32.mrb[0].mxu0
    %622 = vdwg.mxu0
    %v624 = vlaneseq
    %v625 = vshrl.u32 %v624, 7
    %v626 = vsub.s32 0, %v625
    %v627 = vrot.slane %v121, %v626
    %v629 = vadd.f32 %v620, %v627
    %vm630 = vcmask 254976
    %631 = vst.msk [vmem:[#allocation11] sm:$0x3] %vm630, %v629
    %633 = vrot.lane.b32.xlu0 %v620, 48
    %v634 = vpop.permute.xlu0 %633
    %v636 = vadd.f32 %v205, %v634
    %v637 = vadd.f32 %v207, %v634
    %v638 = vxor.u32 %v636, 2147483648
    %v639 = vxor.u32 %v637, 2147483648
    %v640 = vmul.f32 %v638, 1.442695
    %v641 = vpow.pop %v640
    %v642 = vmul.f32 %v639, 1.442695
    %v643 = vpow.pop %v642
    %v644 = vadd.f32 %v641, 1.0
    %v645 = vadd.f32 %v643, 1.0
    %v646 = vrcp.pop %v644
    %v647 = vmul.f32 1.0, %v646
    %v648 = vrcp.pop %v645
    %v649 = vmul.f32 1.0, %v648
    %vm650 = vcmask 648704
    %v651 = vsel %vm650, %v205, -inf
    %652 = vmax.xlane.f32.xlu0 %v651
    %v653 = vpop.xlane.xlu0 %652
    %v654 = vsub.f32 %v205, %v653
    %v655 = vmul.f32 %v654, 1.442695
    %v656 = vpow.pop %v655
    %658 = vrot.lane.b32.xlu0 %v656, 64
    %v659 = vpop.permute.xlu0 %658
    %vm661 = vcmask 123904
    %v662 = vsel %vm661, %v659, 0.0
    %663 = vadd.xlane.f32.xlu0 %v662
    %v664 = vpop.xlane.xlu0 %663
    %v665 = vrcp.pop %v664
    %v666 = vmul.f32 %v656, %v665
    %668 = vrot.lane.b32.xlu0 %v647, 80
    %v669 = vpop.permute.xlu0 %668
    %v671 = vmul.f32 %v209, %v669
    %v673 = vcombine.low %v647, %v649
    %v675 = vunpack.c.l.s4 1966171168
    %v676 = vunpack.c.0.s8 %v675
    %v677 = vlaneseq
    %v678 = vshrl.u32 %v677, 7
    %v679 = vsub.s32 %v676, %v678
    %v680 = vrot.slane %v673, %v679
    %v681 = vcombine.high %v680, %v680
    %v683 = vunpack.c.l.s4 1966171168
    %v684 = vunpack.c.0.s8 %v683
    %v685 = vlaneseq
    %v686 = vshrl.u32 %v685, 7
    %v687 = vsub.s32 %v684, %v686
    %v688 = vrot.slane %v680, %v687
    %v690 = vunpack.c.l.s4 1966171168
    %v691 = vunpack.c.0.s8 %v690
    %v692 = vlaneseq
    %v693 = vshrl.u32 %v692, 7
    %v694 = vsub.s32 %v691, %v693
    %v695 = vrot.slane %v681, %v694
    %v696 = vlaneseq
    %v697 = vshrl.u32 %v696, 7
    %v698 = vsub.s32 0, %v697
    %v699 = vrot.slane %v688, %v698
    %v700 = vlaneseq
    %v701 = vshrl.u32 %v700, 7
    %v702 = vsub.s32 1, %v701
    %v703 = vrot.slane %v688, %v702
    %v704 = vlaneseq
    %v705 = vshrl.u32 %v704, 7
    %v706 = vsub.s32 0, %v705
    %v707 = vrot.slane %v695, %v706
    %v708 = vlaneseq
    %v709 = vshrl.u32 %v708, 7
    %v710 = vsub.s32 1, %v709
    %v711 = vrot.slane %v695, %v710
    %712 = vrot.lane.b32.xlu0 %v699, 16
    %v713 = vpop.permute.xlu0 %712
    %714 = vrot.lane.b32.xlu0 %v703, 16
    %v715 = vpop.permute.xlu0 %714
    %716 = vrot.lane.b32.xlu0 %v707, 16
    %v717 = vpop.permute.xlu0 %716
    %718 = vrot.lane.b32.xlu0 %v711, 16
    %v719 = vpop.permute.xlu0 %718
    %v720 = vsel %vm421, %v713, %v715
    %v721 = vsel %vm421, %v717, %v719
    %v724 = vmul.f32 %v245, %v720
    %v725 = vmul.f32 %v246, %v720
    %v726 = vmul.f32 %v245, %v721
    %v727 = vmul.f32 %v246, %v721
    %v730 = vunpack.c.l.s4 1966171168
    %v731 = vunpack.c.0.s8 %v730
    %v732 = vlaneseq
    %v733 = vshrl.u32 %v732, 7
    %v734 = vsub.s32 %v731, %v733
    %v735 = vrot.slane %v671, %v734
    %v736 = vcombine.high %v735, %v735
    %v738 = vunpack.c.l.s4 1966171168
    %v739 = vunpack.c.0.s8 %v738
    %v740 = vlaneseq
    %v741 = vshrl.u32 %v740, 7
    %v742 = vsub.s32 %v739, %v741
    %v743 = vrot.slane %v735, %v742
    %v745 = vunpack.c.l.s4 1966171168
    %v746 = vunpack.c.0.s8 %v745
    %v747 = vlaneseq
    %v748 = vshrl.u32 %v747, 7
    %v749 = vsub.s32 %v746, %v748
    %v750 = vrot.slane %v736, %v749
    %v751 = vlaneseq
    %v752 = vshrl.u32 %v751, 7
    %v753 = vsub.s32 0, %v752
    %v754 = vrot.slane %v666, %v753
    %s756 = sor.u32 256, 64
    %757 = vbcast.lane.b32.xlu0 %v754, %s756
    %v758 = vpop.permute.xlu0 %757
    %s760 = sor.u32 256, 72
    %761 = vbcast.lane.b32.xlu0 %v754, %s760
    %v762 = vpop.permute.xlu0 %761
    %v763 = vlaneseq
    %v764 = vshrl.u32 %v763, 7
    %v765 = vsub.s32 1, %v764
    %v766 = vrot.slane %v666, %v765
    %s768 = sor.u32 256, 64
    %769 = vbcast.lane.b32.xlu0 %v766, %s768
    %v770 = vpop.permute.xlu0 %769
    %s772 = sor.u32 256, 72
    %773 = vbcast.lane.b32.xlu0 %v766, %s772
    %v774 = vpop.permute.xlu0 %773
    %v775 = vlaneseq
    %v776 = vshrl.u32 %v775, 7
    %v777 = vsub.s32 0, %v776
    %v778 = vrot.slane %v743, %v777
    %v779 = vlaneseq
    %v780 = vshrl.u32 %v779, 7
    %v781 = vsub.s32 0, %v780
    %v782 = vrot.slane %v750, %v781
    %v785 = vmul.f32 %v778, %v758
    %v786 = vmul.f32 %v778, %v762
    %v787 = vmul.f32 %v782, %v770
    %v788 = vmul.f32 %v782, %v774
    %793 = vrot.lane.b32.xlu0 %v785, 96
    %v794 = vpop.permute.xlu0 %793
    %795 = vrot.lane.b32.xlu0 %v786, 96
    %v796 = vpop.permute.xlu0 %795
    %797 = vrot.lane.b32.xlu0 %v787, 96
    %v798 = vpop.permute.xlu0 %797
    %799 = vrot.lane.b32.xlu0 %v788, 96
    %v800 = vpop.permute.xlu0 %799
    %v805 = vadd.f32 %v724, %v794
    %v806 = vadd.f32 %v725, %v796
    %v807 = vadd.f32 %v726, %v798
    %v808 = vadd.f32 %v727, %v800
    %809 = vst.msk [vmem:[#allocation12] sm:$0xff] %vm134, %v805
    %810 = vst.msk [vmem:[#allocation12 + $0x8] sm:$0xff] %vm134, %v806
    %811 = vst.msk [vmem:[#allocation12 + $0x10] sm:$0xff] %vm134, %v807
    %812 = vst.msk [vmem:[#allocation12 + $0x18] sm:$0xff] %vm134, %v808
    // Predicated region
    $region58: #{tpu_custom_call.1} parent=1 // pred_check
      _
    $region59: #{tpu_custom_call.1} parent=1 // pred_check_branch
      %814 = sbr.rel (0) target = $region61
    $region60: #{tpu_custom_call.1} parent=1 // pred_region
      %s816 = ssub.s32 32, 32
      %817 = vsyncadd [#allocation4], %s816
      %s819 = sshll.u32 [#allocation11], 4
      %s820 = int_to_ptr.vmem [resolvable:$true] %s819
      %822 = dma.vmem_to_hbm [thread:$0]  %s820, 32, %s9, [#allocation4]
    $region61: #{tpu_custom_call.1} parent=1 // pred_fallthru
      _
    // Predicated region
    $region62: #{tpu_custom_call.1} parent=1 // pred_check
      _
    $region63: #{tpu_custom_call.1} parent=1 // pred_check_branch
      %824 = sbr.rel (0) target = $region65
    $region64: #{tpu_custom_call.1} parent=1 // pred_region
      %s826 = ssub.s32 512, 512
      %827 = vsyncadd [#allocation13], %s826
      %s828 = sshll.u32 [#allocation12], 4
      %s829 = int_to_ptr.vmem [resolvable:$true] %s828
      %834 = dma.vmem_to_hbm [thread:$0]  %s829, 512, %s10, [#allocation13], 128, 128, 8
    $region65: #{tpu_custom_call.1} parent=1 // pred_fallthru
      _
    // Predicated region
    $region66: #{tpu_custom_call.1} parent=1 // pred_check
      _
    $region67: #{tpu_custom_call.1} parent=1 // pred_check_branch
      %836 = sbr.rel (0) target = $region69
    $region68: #{tpu_custom_call.1} parent=1 // pred_region
      %837 = dma.done [#allocation4], 32
    $region69: #{tpu_custom_call.1} parent=1 // pred_fallthru
      _
    // Predicated region
    $region70: #{tpu_custom_call.1} parent=1 // pred_check
      _
    $region71: #{tpu_custom_call.1} parent=1 // pred_check_branch
      %839 = sbr.rel (0) target = $region73
    $region72: #{tpu_custom_call.1} parent=1 // pred_region
      %840 = dma.done [#allocation13], 512
    $region73: #{tpu_custom_call.1} parent=1 // pred_fallthru
      _
    %841 = vsyncpa [#allocation3], 1
    %842 = vsyncpa [#allocation6], 1
    %843 = vsyncpa [#allocation9], 1
    %844 = vsyncpa [#allocation4], 1
    %845 = vsyncpa [#allocation13], 1

</llo_original>
